<compile_context>
chip_gen: v5e
topology: v5e:2x2
jax: 0.10.0
libtpu: 0.0.40
codegen_flags: <defaults>
</compile_context>

<pallas_src>
import jax
import jax.numpy as jnp
from jax.experimental import pallas as pl
from jax.experimental.pallas import tpu as pltpu


def attention_kernel(v_ref, h_ref, s_ref,
                     wv_ref, bv_ref,
                     wh_ref, bh_ref,
                     ws_ref, bs_ref,
                     watt_ref, batt_ref,
                     watth_ref, batth_ref,
                     chat_ref, alpha_ref, beta_ref):
    Bt, N, H = v_ref.shape
    A = wv_ref.shape[1]

    V3 = v_ref[...]                                     # (Bt, N, H) bf16
    h = h_ref[...]                                      # (Bt, H)    f32
    s = s_ref[...]                                      # (Bt, H)    f32

    # ---- fused projections: bf16 operands on the MXU, f32 accumulation ----
    V2 = V3.reshape(Bt * N, H)                          # collapse batch/seq rows
    WV = jnp.dot(V2, wv_ref[...],
                 preferred_element_type=jnp.float32)                    # (Bt*N, A)
    WV = (WV + bv_ref[...]).reshape(Bt, N, A)
    Wh = jnp.dot(h.astype(jnp.bfloat16), wh_ref[...],
                 preferred_element_type=jnp.float32) + bh_ref[...]      # (Bt, A)
    Ws = jnp.dot(s.astype(jnp.bfloat16), ws_ref[...],
                 preferred_element_type=jnp.float32) + bs_ref[...]      # (Bt, A)

    # ---- attention logits (elementwise kept in f32: v5e-safe, tight numerics) ----
    t = jnp.tanh(WV + Wh[:, None, :])                   # (Bt, N, A)
    # project_att (A -> 1) as a lane reduction (avoids a lane-sparse MXU output)
    z = jnp.sum(t * watt_ref[...], axis=-1) + batt_ref[0]               # (Bt, N)

    t_hat = jnp.tanh(Ws + Wh)                           # (Bt, A)
    z_hat = jnp.sum(t_hat * watth_ref[...], axis=-1,
                    keepdims=True) + batth_ref[0]                       # (Bt, 1)

    # ---- softmax over the sequence axis -> alpha_t ----
    m = jnp.max(z, axis=-1, keepdims=True)              # (Bt, 1)
    e = jnp.exp(z - m)                                  # (Bt, N)
    sum_e = jnp.sum(e, axis=-1, keepdims=True)          # (Bt, 1)
    alpha = e * pl.reciprocal(sum_e, approx=True)       # (Bt, N)

    # ---- context vector c_t = sum_n alpha[:, n] * V[:, n, :] ----
    c_t = jnp.sum(alpha[:, :, None] * V3.astype(jnp.float32), axis=1)   # (Bt, H)

    # ---- beta_t = last element of softmax(cat([z, z_hat], 1)), reusing m/sum_e ----
    m2 = jnp.maximum(m, z_hat)                          # (Bt, 1)
    e_hat = jnp.exp(z_hat - m2)                         # (Bt, 1)
    denom2 = jnp.exp(m - m2) * sum_e + e_hat            # == sum(exp(cat - m2))
    beta = e_hat * pl.reciprocal(denom2, approx=True)   # (Bt, 1)

    c_hat = beta * s + (1.0 - beta) * c_t               # (Bt, H)

    chat_ref[...] = c_hat.astype(chat_ref.dtype)
    alpha_ref[...] = alpha.astype(alpha_ref.dtype)
    beta_ref[...] = beta.astype(beta_ref.dtype)


def _pick_block_b(B, N, H, A, *, vmem_budget_bytes=40 * 1024 * 1024):
    """Batch-row tile: VMEM-budgeted, 8-aligned sublanes, >=2 grid steps if possible."""
    # Grid-step-invariant VMEM: double-buffered weight/bias blocks (Wv/Wh/Ws bf16).
    weight_bytes = 2 * (3 * H * A * 2 + 5 * A * 4)
    # Per-batch-row VMEM: pipeline blocks (x2 buffers) + f32 intermediates.
    per_row = (2 * N * H * 2            # V block (bf16, double buffered)
               + 2 * 2 * H * 4          # h_t / s_t blocks (f32, double buffered)
               + 2 * N * A * 4          # WV and tanh intermediates (f32)
               + 6 * N * 4 + 4 * H * 4  # z/e/alpha temporaries, c_t/c_hat rows
               + 2 * (H + N + 1) * 4)   # output blocks (double buffered)
    max_rows = max(1, (vmem_budget_bytes - weight_bytes) // per_row)

    # Divisors of B with 8-aligned sublane blocks, plus B itself (full dim is
    # always layout-legal).
    cands = sorted({d for d in range(8, B + 1, 8) if B % d == 0} | {B},
                   reverse=True)
    fitting = [d for d in cands if d <= max_rows and d <= 128] or [min(cands)]
    # Prefer >=2 grid steps so dimension_semantics=("parallel",) can shard the
    # batch tiles across both v7x TensorCores; otherwise take the largest tile.
    multi = [d for d in fitting if B // d >= 2]
    return multi[0] if multi else fitting[0]


def attention_forward(V, h_t, s_t,
                      wv, bv, wh, bh, ws, bs,
                      w_att, b_att, w_att_hat, b_att_hat):
    """V: (B,N,H), h_t/s_t: (B,H). Weights stored (in, out); y = x @ W + b."""
    B, N, H = V.shape
    A = wv.shape[1]

    # bf16 MXU operands (halves V's HBM/VMEM traffic); everything else f32.
    V_bf = V.astype(jnp.bfloat16)
    wv_bf = wv.astype(jnp.bfloat16)
    wh_bf = wh.astype(jnp.bfloat16)
    ws_bf = ws.astype(jnp.bfloat16)

    # Lane-friendly 2-D parameter layouts; the two scalar biases go to SMEM.
    bv2 = bv.reshape(1, A)
    bh2 = bh.reshape(1, A)
    bs2 = bs.reshape(1, A)
    watt2 = w_att.reshape(1, A)
    watth2 = w_att_hat.reshape(1, A)
    batt1 = jnp.reshape(b_att, (1,)).astype(jnp.float32)
    batth1 = jnp.reshape(b_att_hat, (1,)).astype(jnp.float32)

    block_b = _pick_block_b(B, N, H, A)
    grid = (B // block_b,)

    const2 = lambda i: (0, 0)
    smem_spec = pl.BlockSpec(memory_space=pltpu.MemorySpace.SMEM)
    grid_spec = pltpu.PrefetchScalarGridSpec(
        num_scalar_prefetch=0,
        grid=grid,
        in_specs=[
            pl.BlockSpec((block_b, N, H), lambda i: (i, 0, 0)),   # V (bf16)
            pl.BlockSpec((block_b, H), lambda i: (i, 0)),         # h_t
            pl.BlockSpec((block_b, H), lambda i: (i, 0)),         # s_t
            pl.BlockSpec((H, A), const2),                         # Wv (bf16)
            pl.BlockSpec((1, A), const2),                         # bv
            pl.BlockSpec((H, A), const2),                         # Wh (bf16)
            pl.BlockSpec((1, A), const2),                         # bh
            pl.BlockSpec((H, A), const2),                         # Ws (bf16)
            pl.BlockSpec((1, A), const2),                         # bs
            pl.BlockSpec((1, A), const2),                         # w_att
            smem_spec,                                            # b_att (SMEM)
            pl.BlockSpec((1, A), const2),                         # w_att_hat
            smem_spec,                                            # b_att_hat (SMEM)
        ],
        out_specs=[
            pl.BlockSpec((block_b, H), lambda i: (i, 0)),         # c_t_hat
            pl.BlockSpec((block_b, N), lambda i: (i, 0)),         # alpha_t
            pl.BlockSpec((block_b, 1), lambda i: (i, 0)),         # beta_t
        ],
    )

    cost = pl.CostEstimate(
        flops=int(2 * B * N * H * A + 4 * B * H * A
                  + 4 * B * N * A + 4 * B * A + 4 * B * N * H),
        transcendentals=int(B * N * A + B * A + B * N + 2 * B),
        bytes_accessed=int(V_bf.size * 2 + (h_t.size + s_t.size) * 4
                           + (wv.size + wh.size + ws.size) * 2
                           + (bv.size + bh.size + bs.size
                              + w_att.size + w_att_hat.size + 2) * 4
                           + (B * H + B * N + B) * 4),
    )

    c_hat, alpha, beta = pl.pallas_call(
        attention_kernel,
        grid_spec=grid_spec,
        out_shape=(
            jax.ShapeDtypeStruct((B, H), jnp.float32),
            jax.ShapeDtypeStruct((B, N), jnp.float32),
            jax.ShapeDtypeStruct((B, 1), jnp.float32),
        ),
        compiler_params=pltpu.CompilerParams(
            dimension_semantics=("parallel",),
            vmem_limit_bytes=48 * 1024 * 1024),
        cost_estimate=cost,
    )(V_bf, h_t, s_t, wv_bf, bv2, wh_bf, bh2, ws_bf, bs2,
      watt2, batt1, watth2, batth1)

    return c_hat, alpha, beta


def attention_reference(V, h_t, s_t,
                        wv, bv, wh, bh, ws, bs,
                        w_att, b_att, w_att_hat, b_att_hat):
    """Pure-JAX (f32) mirror of the PyTorch Attention.forward (weights (in,out))."""
    WV = jnp.einsum("bnh,ha->bna", V, wv) + bv
    Wh = h_t @ wh + bh
    z = jnp.tanh(WV + Wh[:, None, :]) @ w_att + b_att            # (B, N)
    alpha = jax.nn.softmax(z, axis=1)
    c_t = jnp.sum(V * alpha[:, :, None], axis=1)                 # (B, H)
    Ws = s_t @ ws + bs
    z_hat = jnp.tanh(Ws + Wh) @ w_att_hat + b_att_hat            # (B,)
    cat = jnp.concatenate([z, z_hat[:, None]], axis=1)           # (B, N+1)
    alpha_hat = jax.nn.softmax(cat, axis=1)
    beta = alpha_hat[:, -1:]                                     # (B, 1)
    c_hat = beta * s_t + (1.0 - beta) * c_t
    return c_hat, alpha, beta


if __name__ == "__main__":
    # Small but lane-dense shapes; B=16 so the batch-tile grid has 2 steps.
    B, N, H, A = 16, 8, 128, 128

    key = jax.random.PRNGKey(0)
    ks = jax.random.split(key, 13)
    V = jax.random.normal(ks[0], (B, N, H), dtype=jnp.float32)
    h_t = jax.random.normal(ks[1], (B, H), dtype=jnp.float32)
    s_t = jax.random.normal(ks[2], (B, H), dtype=jnp.float32)

    scale = 1.0 / jnp.sqrt(jnp.float32(H))
    wv = jax.random.normal(ks[3], (H, A), dtype=jnp.float32) * scale
    wh = jax.random.normal(ks[4], (H, A), dtype=jnp.float32) * scale
    ws = jax.random.normal(ks[5], (H, A), dtype=jnp.float32) * scale
    bv = jax.random.normal(ks[6], (A,), dtype=jnp.float32) * 0.01
    bh = jax.random.normal(ks[7], (A,), dtype=jnp.float32) * 0.01
    bs = jax.random.normal(ks[8], (A,), dtype=jnp.float32) * 0.01
    w_att = jax.random.normal(ks[9], (A,), dtype=jnp.float32) * (1.0 / jnp.sqrt(jnp.float32(A)))
    w_att_hat = jax.random.normal(ks[10], (A,), dtype=jnp.float32) * (1.0 / jnp.sqrt(jnp.float32(A)))
    b_att = jax.random.normal(ks[11], (), dtype=jnp.float32) * 0.01
    b_att_hat = jax.random.normal(ks[12], (), dtype=jnp.float32) * 0.01

    c_hat, alpha, beta = attention_forward(
        V, h_t, s_t, wv, bv, wh, bh, ws, bs, w_att, b_att, w_att_hat, b_att_hat)
    jax.block_until_ready((c_hat, alpha, beta))

    # ---- self-check against pure-JAX f32 reference ----
    c_hat_r, alpha_r, beta_r = attention_reference(
        V, h_t, s_t, wv, bv, wh, bh, ws, bs, w_att, b_att, w_att_hat, b_att_hat)

    assert c_hat.shape == (B, H)
    assert alpha.shape == (B, N)
    assert beta.shape == (B, 1)
    # tolerances allow for bf16 MXU operands + approximate EUP reciprocals
    assert jnp.allclose(jnp.sum(alpha, axis=1), 1.0, atol=1e-2)
    assert jnp.allclose(alpha, alpha_r, atol=3e-2, rtol=3e-2)
    assert jnp.allclose(beta, beta_r, atol=3e-2, rtol=3e-2)
    assert jnp.allclose(c_hat, c_hat_r, atol=3e-2, rtol=3e-2)

    print("KERNEL_OK")
</pallas_src>

<mosaic_0001>
module attributes {stable_mosaic.version = 11 : i64} {
  func.func @attention_kernel(%arg0: i32, %arg1: memref<8x8x128xbf16, #tpu.memory_space<vmem>>, %arg2: memref<8x128xf32, #tpu.memory_space<vmem>>, %arg3: memref<8x128xf32, #tpu.memory_space<vmem>>, %arg4: memref<128x128xbf16, #tpu.memory_space<vmem>>, %arg5: memref<1x128xf32, #tpu.memory_space<vmem>>, %arg6: memref<128x128xbf16, #tpu.memory_space<vmem>>, %arg7: memref<1x128xf32, #tpu.memory_space<vmem>>, %arg8: memref<128x128xbf16, #tpu.memory_space<vmem>>, %arg9: memref<1x128xf32, #tpu.memory_space<vmem>>, %arg10: memref<1x128xf32, #tpu.memory_space<vmem>>, %arg11: memref<1xf32, #tpu.memory_space<smem>>, %arg12: memref<1x128xf32, #tpu.memory_space<vmem>>, %arg13: memref<1xf32, #tpu.memory_space<smem>>, %arg14: memref<8x128xf32, #tpu.memory_space<vmem>>, %arg15: memref<8x8xf32, #tpu.memory_space<vmem>>, %arg16: memref<8x1xf32, #tpu.memory_space<vmem>>) attributes {dimension_semantics = [#tpu.dimension_semantics<parallel>], iteration_bounds = array<i64: 2>, scalar_prefetch = 0 : i64, scratch_operands = 0 : i64, tpu.core_type = #tpu.core_type<tc>, window_params = [{transform_indices = @transform_0, window_bounds = array<i64: 8, 8, 128>}, {transform_indices = @transform_1, window_bounds = array<i64: 8, 128>}, {transform_indices = @transform_2, window_bounds = array<i64: 8, 128>}, {pipeline_mode = #tpu.pipeline_mode<synchronous>, transform_indices = @transform_3, window_bounds = array<i64: 128, 128>}, {pipeline_mode = #tpu.pipeline_mode<synchronous>, transform_indices = @transform_4, window_bounds = array<i64: 1, 128>}, {pipeline_mode = #tpu.pipeline_mode<synchronous>, transform_indices = @transform_5, window_bounds = array<i64: 128, 128>}, {pipeline_mode = #tpu.pipeline_mode<synchronous>, transform_indices = @transform_6, window_bounds = array<i64: 1, 128>}, {pipeline_mode = #tpu.pipeline_mode<synchronous>, transform_indices = @transform_7, window_bounds = array<i64: 128, 128>}, {pipeline_mode = #tpu.pipeline_mode<synchronous>, transform_indices = @transform_8, window_bounds = array<i64: 1, 128>}, {pipeline_mode = #tpu.pipeline_mode<synchronous>, transform_indices = @transform_9, window_bounds = array<i64: 1, 128>}, {transform_indices = @transform_10, window_bounds = array<i64: 1>}, {pipeline_mode = #tpu.pipeline_mode<synchronous>, transform_indices = @transform_11, window_bounds = array<i64: 1, 128>}, {transform_indices = @transform_12, window_bounds = array<i64: 1>}, {transform_indices = @transform_13, window_bounds = array<i64: 8, 128>}, {transform_indices = @transform_14, window_bounds = array<i64: 8, 8>}, {transform_indices = @transform_15, window_bounds = array<i64: 8, 1>}]} {
    %c0 = arith.constant 0 : index
    %c0_0 = arith.constant 0 : index
    %c0_1 = arith.constant 0 : index
    %0 = vector.load %arg1[%c0, %c0_0, %c0_1] : memref<8x8x128xbf16, #tpu.memory_space<vmem>>, vector<8x8x128xbf16>
    %c0_2 = arith.constant 0 : index
    %c0_3 = arith.constant 0 : index
    %1 = vector.load %arg2[%c0_2, %c0_3] : memref<8x128xf32, #tpu.memory_space<vmem>>, vector<8x128xf32>
    %c0_4 = arith.constant 0 : index
    %c0_5 = arith.constant 0 : index
    %2 = vector.load %arg3[%c0_4, %c0_5] : memref<8x128xf32, #tpu.memory_space<vmem>>, vector<8x128xf32>
    %3 = vector.shape_cast %0 : vector<8x8x128xbf16> to vector<64x128xbf16>
    %c0_6 = arith.constant 0 : index
    %c0_7 = arith.constant 0 : index
    %4 = vector.load %arg4[%c0_6, %c0_7] : memref<128x128xbf16, #tpu.memory_space<vmem>>, vector<128x128xbf16>
    %cst = arith.constant dense<0.000000e+00> : vector<64x128xf32>
    %5 = tpu.matmul %3, %4, %cst {dimension_numbers = #tpu.dot_dimension_numbers<[1], [0], [0], [1], [0, 0, 1, 1], [], []>} : vector<64x128xbf16>, vector<128x128xbf16>, vector<64x128xf32> -> vector<64x128xf32>
    %c0_8 = arith.constant 0 : index
    %c0_9 = arith.constant 0 : index
    %6 = vector.load %arg5[%c0_8, %c0_9] : memref<1x128xf32, #tpu.memory_space<vmem>>, vector<1x128xf32>
    %7 = vector.broadcast %6 : vector<1x128xf32> to vector<64x128xf32>
    %8 = arith.addf %5, %7 : vector<64x128xf32>
    %9 = vector.shape_cast %8 : vector<64x128xf32> to vector<8x8x128xf32>
    %10 = arith.truncf %1 : vector<8x128xf32> to vector<8x128xbf16>
    %c0_10 = arith.constant 0 : index
    %c0_11 = arith.constant 0 : index
    %11 = vector.load %arg6[%c0_10, %c0_11] : memref<128x128xbf16, #tpu.memory_space<vmem>>, vector<128x128xbf16>
    %cst_12 = arith.constant dense<0.000000e+00> : vector<8x128xf32>
    %12 = tpu.matmul %10, %11, %cst_12 {dimension_numbers = #tpu.dot_dimension_numbers<[1], [0], [0], [1], [0, 0, 1, 1], [], []>} : vector<8x128xbf16>, vector<128x128xbf16>, vector<8x128xf32> -> vector<8x128xf32>
    %c0_13 = arith.constant 0 : index
    %c0_14 = arith.constant 0 : index
    %13 = vector.load %arg7[%c0_13, %c0_14] : memref<1x128xf32, #tpu.memory_space<vmem>>, vector<1x128xf32>
    %14 = vector.broadcast %13 : vector<1x128xf32> to vector<8x128xf32>
    %15 = arith.addf %12, %14 : vector<8x128xf32>
    %16 = arith.truncf %2 : vector<8x128xf32> to vector<8x128xbf16>
    %c0_15 = arith.constant 0 : index
    %c0_16 = arith.constant 0 : index
    %17 = vector.load %arg8[%c0_15, %c0_16] : memref<128x128xbf16, #tpu.memory_space<vmem>>, vector<128x128xbf16>
    %cst_17 = arith.constant dense<0.000000e+00> : vector<8x128xf32>
    %18 = tpu.matmul %16, %17, %cst_17 {dimension_numbers = #tpu.dot_dimension_numbers<[1], [0], [0], [1], [0, 0, 1, 1], [], []>} : vector<8x128xbf16>, vector<128x128xbf16>, vector<8x128xf32> -> vector<8x128xf32>
    %c0_18 = arith.constant 0 : index
    %c0_19 = arith.constant 0 : index
    %19 = vector.load %arg9[%c0_18, %c0_19] : memref<1x128xf32, #tpu.memory_space<vmem>>, vector<1x128xf32>
    %20 = vector.broadcast %19 : vector<1x128xf32> to vector<8x128xf32>
    %21 = arith.addf %18, %20 : vector<8x128xf32>
    %22 = vector.shape_cast %15 : vector<8x128xf32> to vector<8x1x128xf32>
    %23 = vector.broadcast %22 : vector<8x1x128xf32> to vector<8x8x128xf32>
    %24 = arith.addf %9, %23 : vector<8x8x128xf32>
    %25 = math.tanh %24 : vector<8x8x128xf32>
    %c0_20 = arith.constant 0 : index
    %c0_21 = arith.constant 0 : index
    %26 = vector.load %arg10[%c0_20, %c0_21] : memref<1x128xf32, #tpu.memory_space<vmem>>, vector<1x128xf32>
    %27 = vector.shape_cast %26 : vector<1x128xf32> to vector<1x1x128xf32>
    %28 = vector.broadcast %27 : vector<1x1x128xf32> to vector<8x8x128xf32>
    %29 = arith.mulf %25, %28 : vector<8x8x128xf32>
    %cst_22 = arith.constant dense<0.000000e+00> : vector<8x8xf32>
    %30 = vector.multi_reduction <add>, %29, %cst_22 [2] : vector<8x8x128xf32> to vector<8x8xf32>
    %c0_23 = arith.constant 0 : index
    %31 = memref.load %arg11[%c0_23] : memref<1xf32, #tpu.memory_space<smem>>
    %32 = vector.broadcast %31 : f32 to vector<8x8xf32>
    %33 = arith.addf %30, %32 : vector<8x8xf32>
    %34 = arith.addf %21, %15 : vector<8x128xf32>
    %35 = math.tanh %34 : vector<8x128xf32>
    %c0_24 = arith.constant 0 : index
    %c0_25 = arith.constant 0 : index
    %36 = vector.load %arg12[%c0_24, %c0_25] : memref<1x128xf32, #tpu.memory_space<vmem>>, vector<1x128xf32>
    %37 = vector.broadcast %36 : vector<1x128xf32> to vector<8x128xf32>
    %38 = arith.mulf %35, %37 : vector<8x128xf32>
    %cst_26 = arith.constant dense<0.000000e+00> : vector<8xf32>
    %39 = vector.multi_reduction <add>, %38, %cst_26 [1] : vector<8x128xf32> to vector<8xf32>
    %40 = vector.shape_cast %39 : vector<8xf32> to vector<8x1xf32>
    %c0_27 = arith.constant 0 : index
    %41 = memref.load %arg13[%c0_27] : memref<1xf32, #tpu.memory_space<smem>>
    %42 = vector.broadcast %41 : f32 to vector<8x1xf32>
    %43 = arith.addf %40, %42 : vector<8x1xf32>
    %cst_28 = arith.constant dense<0xFF800000> : vector<8xf32>
    %44 = vector.multi_reduction <maximumf>, %33, %cst_28 [1] : vector<8x8xf32> to vector<8xf32>
    %45 = vector.shape_cast %44 : vector<8xf32> to vector<8x1xf32>
    %46 = vector.broadcast %45 : vector<8x1xf32> to vector<8x8xf32>
    %47 = arith.subf %33, %46 : vector<8x8xf32>
    %48 = math.exp %47 : vector<8x8xf32>
    %cst_29 = arith.constant dense<0.000000e+00> : vector<8xf32>
    %49 = vector.multi_reduction <add>, %48, %cst_29 [1] : vector<8x8xf32> to vector<8xf32>
    %50 = vector.shape_cast %49 : vector<8xf32> to vector<8x1xf32>
    %51 = tpu.reciprocal %50 {approx = true} : vector<8x1xf32> -> vector<8x1xf32>
    %52 = vector.broadcast %51 : vector<8x1xf32> to vector<8x8xf32>
    %53 = arith.mulf %48, %52 : vector<8x8xf32>
    %54 = vector.shape_cast %53 : vector<8x8xf32> to vector<8x8x1xf32>
    %55 = arith.extf %0 : vector<8x8x128xbf16> to vector<8x8x128xf32>
    %56 = vector.broadcast %54 : vector<8x8x1xf32> to vector<8x8x128xf32>
    %57 = arith.mulf %56, %55 : vector<8x8x128xf32>
    %cst_30 = arith.constant dense<0.000000e+00> : vector<8x128xf32>
    %58 = vector.multi_reduction <add>, %57, %cst_30 [1] : vector<8x8x128xf32> to vector<8x128xf32>
    %59 = arith.maximumf %45, %43 : vector<8x1xf32>
    %60 = arith.subf %43, %59 : vector<8x1xf32>
    %61 = math.exp %60 : vector<8x1xf32>
    %62 = arith.subf %45, %59 : vector<8x1xf32>
    %63 = math.exp %62 : vector<8x1xf32>
    %64 = arith.mulf %63, %50 : vector<8x1xf32>
    %65 = arith.addf %64, %61 : vector<8x1xf32>
    %66 = tpu.reciprocal %65 {approx = true} : vector<8x1xf32> -> vector<8x1xf32>
    %67 = arith.mulf %61, %66 : vector<8x1xf32>
    %68 = vector.broadcast %67 : vector<8x1xf32> to vector<8x128xf32>
    %69 = arith.mulf %68, %2 : vector<8x128xf32>
    %cst_31 = arith.constant 1.000000e+00 : f32
    %70 = vector.broadcast %cst_31 : f32 to vector<8x1xf32>
    %71 = arith.subf %70, %67 : vector<8x1xf32>
    %72 = vector.broadcast %71 : vector<8x1xf32> to vector<8x128xf32>
    %73 = arith.mulf %72, %58 : vector<8x128xf32>
    %74 = arith.addf %69, %73 : vector<8x128xf32>
    %c0_32 = arith.constant 0 : index
    %c0_33 = arith.constant 0 : index
    %75 = vector.load %arg14[%c0_32, %c0_33] : memref<8x128xf32, #tpu.memory_space<vmem>>, vector<8x128xf32>
    tpu.vector_store %arg14[%c0_32, %c0_33], %74 {strides = array<i32>} : memref<8x128xf32, #tpu.memory_space<vmem>>, vector<8x128xf32>,
    %c0_34 = arith.constant 0 : index
    %c0_35 = arith.constant 0 : index
    %76 = vector.load %arg15[%c0_34, %c0_35] : memref<8x8xf32, #tpu.memory_space<vmem>>, vector<8x8xf32>
    tpu.vector_store %arg15[%c0_34, %c0_35], %53 {strides = array<i32>} : memref<8x8xf32, #tpu.memory_space<vmem>>, vector<8x8xf32>,
    %c0_36 = arith.constant 0 : index
    %c0_37 = arith.constant 0 : index
    %77 = vector.load %arg16[%c0_36, %c0_37] : memref<8x1xf32, #tpu.memory_space<vmem>>, vector<8x1xf32>
    tpu.vector_store %arg16[%c0_36, %c0_37], %67 {strides = array<i32>} : memref<8x1xf32, #tpu.memory_space<vmem>>, vector<8x1xf32>,
    return
  }
  func.func @transform_0(%arg0: i32) -> (i32, i32, i32) {
    %c0_i32 = arith.constant 0 : i32
    %c0_i32_0 = arith.constant 0 : i32
    %c0_i32_1 = arith.constant 0 : i32
    return %arg0, %c0_i32, %c0_i32_0 : i32, i32, i32
  }
  func.func @transform_1(%arg0: i32) -> (i32, i32) {
    %c0_i32 = arith.constant 0 : i32
    %c0_i32_0 = arith.constant 0 : i32
    return %arg0, %c0_i32 : i32, i32
  }
  func.func @transform_2(%arg0: i32) -> (i32, i32) {
    %c0_i32 = arith.constant 0 : i32
    %c0_i32_0 = arith.constant 0 : i32
    return %arg0, %c0_i32 : i32, i32
  }
  func.func @transform_3(%arg0: i32) -> (i32, i32) {
    %c0_i32 = arith.constant 0 : i32
    %c0_i32_0 = arith.constant 0 : i32
    %c0_i32_1 = arith.constant 0 : i32
    return %c0_i32, %c0_i32_0 : i32, i32
  }
  func.func @transform_4(%arg0: i32) -> (i32, i32) {
    %c0_i32 = arith.constant 0 : i32
    %c0_i32_0 = arith.constant 0 : i32
    %c0_i32_1 = arith.constant 0 : i32
    return %c0_i32, %c0_i32_0 : i32, i32
  }
  func.func @transform_5(%arg0: i32) -> (i32, i32) {
    %c0_i32 = arith.constant 0 : i32
    %c0_i32_0 = arith.constant 0 : i32
    %c0_i32_1 = arith.constant 0 : i32
    return %c0_i32, %c0_i32_0 : i32, i32
  }
  func.func @transform_6(%arg0: i32) -> (i32, i32) {
    %c0_i32 = arith.constant 0 : i32
    %c0_i32_0 = arith.constant 0 : i32
    %c0_i32_1 = arith.constant 0 : i32
    return %c0_i32, %c0_i32_0 : i32, i32
  }
  func.func @transform_7(%arg0: i32) -> (i32, i32) {
    %c0_i32 = arith.constant 0 : i32
    %c0_i32_0 = arith.constant 0 : i32
    %c0_i32_1 = arith.constant 0 : i32
    return %c0_i32, %c0_i32_0 : i32, i32
  }
  func.func @transform_8(%arg0: i32) -> (i32, i32) {
    %c0_i32 = arith.constant 0 : i32
    %c0_i32_0 = arith.constant 0 : i32
    %c0_i32_1 = arith.constant 0 : i32
    return %c0_i32, %c0_i32_0 : i32, i32
  }
  func.func @transform_9(%arg0: i32) -> (i32, i32) {
    %c0_i32 = arith.constant 0 : i32
    %c0_i32_0 = arith.constant 0 : i32
    %c0_i32_1 = arith.constant 0 : i32
    return %c0_i32, %c0_i32_0 : i32, i32
  }
  func.func @transform_10(%arg0: i32) -> i32 {
    %c0_i32 = arith.constant 0 : i32
    %c0_i32_0 = arith.constant 0 : i32
    return %c0_i32 : i32
  }
  func.func @transform_11(%arg0: i32) -> (i32, i32) {
    %c0_i32 = arith.constant 0 : i32
    %c0_i32_0 = arith.constant 0 : i32
    %c0_i32_1 = arith.constant 0 : i32
    return %c0_i32, %c0_i32_0 : i32, i32
  }
  func.func @transform_12(%arg0: i32) -> i32 {
    %c0_i32 = arith.constant 0 : i32
    %c0_i32_0 = arith.constant 0 : i32
    return %c0_i32 : i32
  }
  func.func @transform_13(%arg0: i32) -> (i32, i32) {
    %c0_i32 = arith.constant 0 : i32
    %c0_i32_0 = arith.constant 0 : i32
    return %arg0, %c0_i32 : i32, i32
  }
  func.func @transform_14(%arg0: i32) -> (i32, i32) {
    %c0_i32 = arith.constant 0 : i32
    %c0_i32_0 = arith.constant 0 : i32
    return %arg0, %c0_i32 : i32, i32
  }
  func.func @transform_15(%arg0: i32) -> (i32, i32) {
    %c0_i32 = arith.constant 0 : i32
    %c0_i32_0 = arith.constant 0 : i32
    return %arg0, %c0_i32 : i32, i32
  }
}

</mosaic_0001>

<llo_original>
// kernel: tpu_custom_call.1
$region0: #{tpu_custom_call.1}
  #allocation0 [shape = 'u32[]', space=smem, size = 0x4, offset = 0x4, fixed_abs, tag = 'smem constant byte address 0x4 - core index']
  #allocation1 [shape = 'u32[72,128]{1,0:T(1,128)}', space=vmem, size = 0x9000, scoped, tag = 'internal scratch']
  #allocation2 [shape = 'f32[1]{0:T(128)S(6)}', space=smem, size = 0x200, scoped, tag = 'scoped memory for tpu_custom_call.1']
  #allocation3 [shape = 'f32[1]{0:T(128)S(6)}', space=smem, size = 0x200, scoped, tag = 'scoped memory for tpu_custom_call.1']
  %s0 = inlined_call_operand.hbm [shape: bf16[16,8,128], index: 0, kind: input, shape index: {}]
  %s1 = inlined_call_operand.hbm [shape: f32[16,128], index: 1, kind: input, shape index: {}]
  %s2 = inlined_call_operand.hbm [shape: f32[16,128], index: 2, kind: input, shape index: {}]
  %s3 = inlined_call_operand.hbm [shape: bf16[128,128], index: 3, kind: input, shape index: {}]
  %s4 = inlined_call_operand.vmem [shape: f32[1,128], index: 4, kind: input, shape index: {}]
  %s5 = inlined_call_operand.hbm [shape: bf16[128,128], index: 5, kind: input, shape index: {}]
  %s6 = inlined_call_operand.vmem [shape: f32[1,128], index: 6, kind: input, shape index: {}]
  %s7 = inlined_call_operand.hbm [shape: bf16[128,128], index: 7, kind: input, shape index: {}]
  %s8 = inlined_call_operand.vmem [shape: f32[1,128], index: 8, kind: input, shape index: {}]
  %s9 = inlined_call_operand.vmem [shape: f32[1,128], index: 9, kind: input, shape index: {}]
  %s10 = inlined_call_operand.<no memory space> [shape: f32[1], index: 10, kind: input, shape index: {}]
  %s11 = inlined_call_operand.vmem [shape: f32[1,128], index: 11, kind: input, shape index: {}]
  %s12 = inlined_call_operand.<no memory space> [shape: f32[1], index: 12, kind: input, shape index: {}]
  %s13 = inlined_call_operand.hbm [shape: f32[16,128], index: 13, kind: output, shape index: {0}]
  %s14 = inlined_call_operand.vmem [shape: f32[16,8], index: 14, kind: output, shape index: {1}]
  %s15 = inlined_call_operand.vmem [shape: f32[16,1], index: 15, kind: output, shape index: {2}]
  %16 = xla_tuple %s13, %s14, %s15
  %s17 = sld [smem:[#allocation0]]
  $region125: #{tpu_custom_call.1} parent=0
    _
  %s19 = ssub.s32 1, %s17
  %s20 = scalar_select 0, %s19, %s17
  %21 = sst [smem:[#allocation2]] %s10
  %22 = sst [smem:[#allocation3]] %s12
  $region1: #{tpu_custom_call.1} parent=0
    #allocation4 [shape = 'u8[32768]{0}', space=vmem, size = 0x8000, scoped, tag = 'input window, operand 0']
    #allocation5 [shape = 's32[2]{0}', space=sflag, size = 0x8, scoped, tag = 'scoped memory for tpu_custom_call.1']
    #allocation6 [shape = 's32[2]{0}', space=sflag, size = 0x8, scoped, tag = 'scoped memory for tpu_custom_call.1']
    #allocation7 [shape = 'u8[8192]{0}', space=vmem, size = 0x2000, scoped, tag = 'input window, operand 1']
    #allocation8 [shape = 's32[2]{0}', space=sflag, size = 0x8, scoped, tag = 'scoped memory for tpu_custom_call.1']
    #allocation9 [shape = 'u8[8192]{0}', space=vmem, size = 0x2000, scoped, tag = 'input window, operand 2']
    #allocation10 [shape = 'u8[32768]{0}', space=vmem, size = 0x8000, scoped, tag = 'input window, operand 3, single buffered']
    #allocation11 [shape = 's32[1]{0}', space=sflag, size = 0x4, scoped, tag = 'scoped memory for tpu_custom_call.1']
    #allocation12 [shape = 'u8[32768]{0}', space=vmem, size = 0x8000, scoped, tag = 'input window, operand 5, single buffered']
    #allocation13 [shape = 'u8[32768]{0}', space=vmem, size = 0x8000, scoped, tag = 'input window, operand 7, single buffered']
    #allocation14 [shape = 's32[1]{0}', space=sflag, size = 0x4, scoped, tag = 'scoped memory for tpu_custom_call.1']
    #allocation15 [shape = 'u8[8192]{0}', space=vmem, size = 0x2000, scoped, tag = 'output window, operand 0']
    %23 = vsyncpa [#allocation5], 0
    %s24 = scalar_lea.sflag [#allocation5], 1
    %25 = vsyncpa %s24, 0
    %26 = vsyncpa [#allocation8], 0
    %s27 = scalar_lea.sflag [#allocation8], 1
    %28 = vsyncpa %s27, 0
    %29 = vsyncpa [#allocation11], 0
    %30 = vsyncpa [#allocation14], 0
    %31 = vsyncpa [#allocation6], 0
    %s32 = scalar_lea.sflag [#allocation6], 1
    %33 = vsyncpa %s32, 0
    loop: start=0, step=1, limit=4
    $region2: #{tpu_custom_call.1} parent=1 // loop_pre_header
      _
    $region3: #{tpu_custom_call.1} parent=1 // loop_header
      %s35 = sphi 0, %s39
      %p36 = scmp.ge.s32.totalorder %s35, 4
      %s45 = sphi 0, %s47
      %s48 = sphi 0, %s45
      %s49 = sphi 0, %s48
      %s65 = sphi 0, %s49
      %s71 = sphi 0, %s73
      %s74 = sphi 0, %s71
      %s75 = sphi 0, %s74
      %s91 = sphi 0, %s75
      %s97 = sphi 0, %s99
      %s100 = sphi 0, %s97
      %s101 = sphi 0, %s100
      %s117 = sphi 0, %s101
      %s121 = sphi 0, %s121
      %s123 = sphi 0, %s121
      %s124 = sphi 0, %s123
      %s138 = sphi 0, %s124
      %s142 = sphi 0, %s142
      %s144 = sphi 0, %s142
      %s145 = sphi 0, %s144
      %s159 = sphi 0, %s145
      %s163 = sphi 0, %s163
      %s165 = sphi 0, %s163
      %s166 = sphi 0, %s165
      %s180 = sphi 0, %s166
      %s184 = sphi 0, %s184
      %s186 = sphi 0, %s184
      %s187 = sphi 0, %s186
      %s201 = sphi 0, %s187
      %s205 = sphi 0, %s205
      %s207 = sphi 0, %s205
      %s208 = sphi 0, %s207
      %s222 = sphi 0, %s208
      %s226 = sphi 0, %s226
      %s228 = sphi 0, %s226
      %s229 = sphi 0, %s228
      %s243 = sphi 0, %s229
      %s247 = sphi 0, %s247
      %s249 = sphi 0, %s247
      %s250 = sphi 0, %s249
      %s264 = sphi 0, %s250
      %s268 = sphi 0, %s268
      %s270 = sphi 0, %s268
      %s271 = sphi 0, %s270
      %s285 = sphi 0, %s271
      %s289 = sphi 0, %s289
      %s291 = sphi 0, %s289
      %s292 = sphi 0, %s291
      %s306 = sphi 0, %s292
      %s310 = sphi 0, %s310
      %s312 = sphi 0, %s310
      %s313 = sphi 0, %s312
      %s327 = sphi 0, %s313
      %s333 = sphi 0, %s335
      %s336 = sphi 0, %s333
      %s337 = sphi 0, %s336
      %s353 = sphi 0, %s337
      %s359 = sphi 0, %s361
      %s362 = sphi 0, %s359
      %s363 = sphi 0, %s362
      %s379 = sphi 0, %s363
      %s385 = sphi 0, %s387
      %s388 = sphi 0, %s385
      %s389 = sphi 0, %s388
      %s405 = sphi 0, %s389
    $region4: #{tpu_custom_call.1} parent=1 // loop_header_branch
      %38 = sbr.rel (%p36) target = $region8
    $region5: #{tpu_custom_call.1} parent=1 // loop_body
      %s40 = ssub.s32 %s35, 1
      %s41 = ssub.s32 %s35, 2
      %s42 = sadd.s32 %s35, 1
      %s43 = ssub.s32 %s35, %s42
      %p44 = scmp.eq.s32.totalorder %s43, 0
      %s46 = sadd.s32 %s45, 1
      %s47 = scalar_select %p44, %s45, %s46
      %p50 = pneg %p44
      %p51 = scmp.eq.s32.totalorder %s35, 1
      %p52 = por %p50, %p51
      %p53 = scmp.ne.s32.totalorder %s45, %s48
      %p54 = scmp.eq.s32.totalorder %s35, 0
      %p55 = por %p53, %p54
      %p56 = scmp.ne.s32.totalorder %s45, %s48
      %p57 = scmp.eq.s32.totalorder %s40, 1
      %p58 = por %p56, %p57
      %p59 = scmp.ne.s32.totalorder %s48, %s49
      %p60 = scmp.eq.s32.totalorder %s40, 0
      %p61 = por %p59, %p60
      %p62 = scmp.ne.s32.totalorder %s48, %s49
      %p63 = scmp.eq.s32.totalorder %s41, 1
      %p64 = por %p62, %p63
      %p66 = scmp.ne.s32.totalorder %s49, %s65
      %p67 = scmp.eq.s32.totalorder %s41, 0
      %p68 = por %p66, %p67
      %s69 = ssub.s32 %s35, %s42
      %p70 = scmp.eq.s32.totalorder %s69, 0
      %s72 = sadd.s32 %s71, 1
      %s73 = scalar_select %p70, %s71, %s72
      %p76 = pneg %p70
      %p77 = scmp.eq.s32.totalorder %s35, 1
      %p78 = por %p76, %p77
      %p79 = scmp.ne.s32.totalorder %s71, %s74
      %p80 = scmp.eq.s32.totalorder %s35, 0
      %p81 = por %p79, %p80
      %p82 = scmp.ne.s32.totalorder %s71, %s74
      %p83 = scmp.eq.s32.totalorder %s40, 1
      %p84 = por %p82, %p83
      %p85 = scmp.ne.s32.totalorder %s74, %s75
      %p86 = scmp.eq.s32.totalorder %s40, 0
      %p87 = por %p85, %p86
      %p88 = scmp.ne.s32.totalorder %s74, %s75
      %p89 = scmp.eq.s32.totalorder %s41, 1
      %p90 = por %p88, %p89
      %p92 = scmp.ne.s32.totalorder %s75, %s91
      %p93 = scmp.eq.s32.totalorder %s41, 0
      %p94 = por %p92, %p93
      %s95 = ssub.s32 %s35, %s42
      %p96 = scmp.eq.s32.totalorder %s95, 0
      %s98 = sadd.s32 %s97, 1
      %s99 = scalar_select %p96, %s97, %s98
      %p102 = pneg %p96
      %p103 = scmp.eq.s32.totalorder %s35, 1
      %p104 = por %p102, %p103
      %p105 = scmp.ne.s32.totalorder %s97, %s100
      %p106 = scmp.eq.s32.totalorder %s35, 0
      %p107 = por %p105, %p106
      %p108 = scmp.ne.s32.totalorder %s97, %s100
      %p109 = scmp.eq.s32.totalorder %s40, 1
      %p110 = por %p108, %p109
      %p111 = scmp.ne.s32.totalorder %s100, %s101
      %p112 = scmp.eq.s32.totalorder %s40, 0
      %p113 = por %p111, %p112
      %p114 = scmp.ne.s32.totalorder %s100, %s101
      %p115 = scmp.eq.s32.totalorder %s41, 1
      %p116 = por %p114, %p115
      %p118 = scmp.ne.s32.totalorder %s101, %s117
      %p119 = scmp.eq.s32.totalorder %s41, 0
      %p120 = por %p118, %p119
      %s122 = sadd.s32 %s121, 1
      %p125 = scmp.eq.s32.totalorder %s35, 1
      %p126 = scmp.ne.s32.totalorder %s121, %s123
      %p127 = scmp.eq.s32.totalorder %s35, 0
      %p128 = por %p126, %p127
      %p129 = scmp.ne.s32.totalorder %s121, %s123
      %p130 = scmp.eq.s32.totalorder %s40, 1
      %p131 = por %p129, %p130
      %p132 = scmp.ne.s32.totalorder %s123, %s124
      %p133 = scmp.eq.s32.totalorder %s40, 0
      %p134 = por %p132, %p133
      %p135 = scmp.ne.s32.totalorder %s123, %s124
      %p136 = scmp.eq.s32.totalorder %s41, 1
      %p137 = por %p135, %p136
      %p139 = scmp.ne.s32.totalorder %s124, %s138
      %p140 = scmp.eq.s32.totalorder %s41, 0
      %p141 = por %p139, %p140
      %s143 = sadd.s32 %s142, 1
      %p146 = scmp.eq.s32.totalorder %s35, 1
      %p147 = scmp.ne.s32.totalorder %s142, %s144
      %p148 = scmp.eq.s32.totalorder %s35, 0
      %p149 = por %p147, %p148
      %p150 = scmp.ne.s32.totalorder %s142, %s144
      %p151 = scmp.eq.s32.totalorder %s40, 1
      %p152 = por %p150, %p151
      %p153 = scmp.ne.s32.totalorder %s144, %s145
      %p154 = scmp.eq.s32.totalorder %s40, 0
      %p155 = por %p153, %p154
      %p156 = scmp.ne.s32.totalorder %s144, %s145
      %p157 = scmp.eq.s32.totalorder %s41, 1
      %p158 = por %p156, %p157
      %p160 = scmp.ne.s32.totalorder %s145, %s159
      %p161 = scmp.eq.s32.totalorder %s41, 0
      %p162 = por %p160, %p161
      %s164 = sadd.s32 %s163, 1
      %p167 = scmp.eq.s32.totalorder %s35, 1
      %p168 = scmp.ne.s32.totalorder %s163, %s165
      %p169 = scmp.eq.s32.totalorder %s35, 0
      %p170 = por %p168, %p169
      %p171 = scmp.ne.s32.totalorder %s163, %s165
      %p172 = scmp.eq.s32.totalorder %s40, 1
      %p173 = por %p171, %p172
      %p174 = scmp.ne.s32.totalorder %s165, %s166
      %p175 = scmp.eq.s32.totalorder %s40, 0
      %p176 = por %p174, %p175
      %p177 = scmp.ne.s32.totalorder %s165, %s166
      %p178 = scmp.eq.s32.totalorder %s41, 1
      %p179 = por %p177, %p178
      %p181 = scmp.ne.s32.totalorder %s166, %s180
      %p182 = scmp.eq.s32.totalorder %s41, 0
      %p183 = por %p181, %p182
      %s185 = sadd.s32 %s184, 1
      %p188 = scmp.eq.s32.totalorder %s35, 1
      %p189 = scmp.ne.s32.totalorder %s184, %s186
      %p190 = scmp.eq.s32.totalorder %s35, 0
      %p191 = por %p189, %p190
      %p192 = scmp.ne.s32.totalorder %s184, %s186
      %p193 = scmp.eq.s32.totalorder %s40, 1
      %p194 = por %p192, %p193
      %p195 = scmp.ne.s32.totalorder %s186, %s187
      %p196 = scmp.eq.s32.totalorder %s40, 0
      %p197 = por %p195, %p196
      %p198 = scmp.ne.s32.totalorder %s186, %s187
      %p199 = scmp.eq.s32.totalorder %s41, 1
      %p200 = por %p198, %p199
      %p202 = scmp.ne.s32.totalorder %s187, %s201
      %p203 = scmp.eq.s32.totalorder %s41, 0
      %p204 = por %p202, %p203
      %s206 = sadd.s32 %s205, 1
      %p209 = scmp.eq.s32.totalorder %s35, 1
      %p210 = scmp.ne.s32.totalorder %s205, %s207
      %p211 = scmp.eq.s32.totalorder %s35, 0
      %p212 = por %p210, %p211
      %p213 = scmp.ne.s32.totalorder %s205, %s207
      %p214 = scmp.eq.s32.totalorder %s40, 1
      %p215 = por %p213, %p214
      %p216 = scmp.ne.s32.totalorder %s207, %s208
      %p217 = scmp.eq.s32.totalorder %s40, 0
      %p218 = por %p216, %p217
      %p219 = scmp.ne.s32.totalorder %s207, %s208
      %p220 = scmp.eq.s32.totalorder %s41, 1
      %p221 = por %p219, %p220
      %p223 = scmp.ne.s32.totalorder %s208, %s222
      %p224 = scmp.eq.s32.totalorder %s41, 0
      %p225 = por %p223, %p224
      %s227 = sadd.s32 %s226, 1
      %p230 = scmp.eq.s32.totalorder %s35, 1
      %p231 = scmp.ne.s32.totalorder %s226, %s228
      %p232 = scmp.eq.s32.totalorder %s35, 0
      %p233 = por %p231, %p232
      %p234 = scmp.ne.s32.totalorder %s226, %s228
      %p235 = scmp.eq.s32.totalorder %s40, 1
      %p236 = por %p234, %p235
      %p237 = scmp.ne.s32.totalorder %s228, %s229
      %p238 = scmp.eq.s32.totalorder %s40, 0
      %p239 = por %p237, %p238
      %p240 = scmp.ne.s32.totalorder %s228, %s229
      %p241 = scmp.eq.s32.totalorder %s41, 1
      %p242 = por %p240, %p241
      %p244 = scmp.ne.s32.totalorder %s229, %s243
      %p245 = scmp.eq.s32.totalorder %s41, 0
      %p246 = por %p244, %p245
      %s248 = sadd.s32 %s247, 1
      %p251 = scmp.eq.s32.totalorder %s35, 1
      %p252 = scmp.ne.s32.totalorder %s247, %s249
      %p253 = scmp.eq.s32.totalorder %s35, 0
      %p254 = por %p252, %p253
      %p255 = scmp.ne.s32.totalorder %s247, %s249
      %p256 = scmp.eq.s32.totalorder %s40, 1
      %p257 = por %p255, %p256
      %p258 = scmp.ne.s32.totalorder %s249, %s250
      %p259 = scmp.eq.s32.totalorder %s40, 0
      %p260 = por %p258, %p259
      %p261 = scmp.ne.s32.totalorder %s249, %s250
      %p262 = scmp.eq.s32.totalorder %s41, 1
      %p263 = por %p261, %p262
      %p265 = scmp.ne.s32.totalorder %s250, %s264
      %p266 = scmp.eq.s32.totalorder %s41, 0
      %p267 = por %p265, %p266
      %s269 = sadd.s32 %s268, 1
      %p272 = scmp.eq.s32.totalorder %s35, 1
      %p273 = scmp.ne.s32.totalorder %s268, %s270
      %p274 = scmp.eq.s32.totalorder %s35, 0
      %p275 = por %p273, %p274
      %p276 = scmp.ne.s32.totalorder %s268, %s270
      %p277 = scmp.eq.s32.totalorder %s40, 1
      %p278 = por %p276, %p277
      %p279 = scmp.ne.s32.totalorder %s270, %s271
      %p280 = scmp.eq.s32.totalorder %s40, 0
      %p281 = por %p279, %p280
      %p282 = scmp.ne.s32.totalorder %s270, %s271
      %p283 = scmp.eq.s32.totalorder %s41, 1
      %p284 = por %p282, %p283
      %p286 = scmp.ne.s32.totalorder %s271, %s285
      %p287 = scmp.eq.s32.totalorder %s41, 0
      %p288 = por %p286, %p287
      %s290 = sadd.s32 %s289, 1
      %p293 = scmp.eq.s32.totalorder %s35, 1
      %p294 = scmp.ne.s32.totalorder %s289, %s291
      %p295 = scmp.eq.s32.totalorder %s35, 0
      %p296 = por %p294, %p295
      %p297 = scmp.ne.s32.totalorder %s289, %s291
      %p298 = scmp.eq.s32.totalorder %s40, 1
      %p299 = por %p297, %p298
      %p300 = scmp.ne.s32.totalorder %s291, %s292
      %p301 = scmp.eq.s32.totalorder %s40, 0
      %p302 = por %p300, %p301
      %p303 = scmp.ne.s32.totalorder %s291, %s292
      %p304 = scmp.eq.s32.totalorder %s41, 1
      %p305 = por %p303, %p304
      %p307 = scmp.ne.s32.totalorder %s292, %s306
      %p308 = scmp.eq.s32.totalorder %s41, 0
      %p309 = por %p307, %p308
      %s311 = sadd.s32 %s310, 1
      %p314 = scmp.eq.s32.totalorder %s35, 1
      %p315 = scmp.ne.s32.totalorder %s310, %s312
      %p316 = scmp.eq.s32.totalorder %s35, 0
      %p317 = por %p315, %p316
      %p318 = scmp.ne.s32.totalorder %s310, %s312
      %p319 = scmp.eq.s32.totalorder %s40, 1
      %p320 = por %p318, %p319
      %p321 = scmp.ne.s32.totalorder %s312, %s313
      %p322 = scmp.eq.s32.totalorder %s40, 0
      %p323 = por %p321, %p322
      %p324 = scmp.ne.s32.totalorder %s312, %s313
      %p325 = scmp.eq.s32.totalorder %s41, 1
      %p326 = por %p324, %p325
      %p328 = scmp.ne.s32.totalorder %s313, %s327
      %p329 = scmp.eq.s32.totalorder %s41, 0
      %p330 = por %p328, %p329
      %s331 = ssub.s32 %s35, %s42
      %p332 = scmp.eq.s32.totalorder %s331, 0
      %s334 = sadd.s32 %s333, 1
      %s335 = scalar_select %p332, %s333, %s334
      %p338 = pneg %p332
      %p339 = scmp.eq.s32.totalorder %s35, 1
      %p340 = por %p338, %p339
      %p341 = scmp.ne.s32.totalorder %s333, %s336
      %p342 = scmp.eq.s32.totalorder %s35, 0
      %p343 = por %p341, %p342
      %p344 = scmp.ne.s32.totalorder %s333, %s336
      %p345 = scmp.eq.s32.totalorder %s40, 1
      %p346 = por %p344, %p345
      %p347 = scmp.ne.s32.totalorder %s336, %s337
      %p348 = scmp.eq.s32.totalorder %s40, 0
      %p349 = por %p347, %p348
      %p350 = scmp.ne.s32.totalorder %s336, %s337
      %p351 = scmp.eq.s32.totalorder %s41, 1
      %p352 = por %p350, %p351
      %p354 = scmp.ne.s32.totalorder %s337, %s353
      %p355 = scmp.eq.s32.totalorder %s41, 0
      %p356 = por %p354, %p355
      %s357 = ssub.s32 %s35, %s42
      %p358 = scmp.eq.s32.totalorder %s357, 0
      %s360 = sadd.s32 %s359, 1
      %s361 = scalar_select %p358, %s359, %s360
      %p364 = pneg %p358
      %p365 = scmp.eq.s32.totalorder %s35, 1
      %p366 = por %p364, %p365
      %p367 = scmp.ne.s32.totalorder %s359, %s362
      %p368 = scmp.eq.s32.totalorder %s35, 0
      %p369 = por %p367, %p368
      %p370 = scmp.ne.s32.totalorder %s359, %s362
      %p371 = scmp.eq.s32.totalorder %s40, 1
      %p372 = por %p370, %p371
      %p373 = scmp.ne.s32.totalorder %s362, %s363
      %p374 = scmp.eq.s32.totalorder %s40, 0
      %p375 = por %p373, %p374
      %p376 = scmp.ne.s32.totalorder %s362, %s363
      %p377 = scmp.eq.s32.totalorder %s41, 1
      %p378 = por %p376, %p377
      %p380 = scmp.ne.s32.totalorder %s363, %s379
      %p381 = scmp.eq.s32.totalorder %s41, 0
      %p382 = por %p380, %p381
      %s383 = ssub.s32 %s35, %s42
      %p384 = scmp.eq.s32.totalorder %s383, 0
      %s386 = sadd.s32 %s385, 1
      %s387 = scalar_select %p384, %s385, %s386
      %p390 = pneg %p384
      %p391 = scmp.eq.s32.totalorder %s35, 1
      %p392 = por %p390, %p391
      %p393 = scmp.ne.s32.totalorder %s385, %s388
      %p394 = scmp.eq.s32.totalorder %s35, 0
      %p395 = por %p393, %p394
      %p396 = scmp.ne.s32.totalorder %s385, %s388
      %p397 = scmp.eq.s32.totalorder %s40, 1
      %p398 = por %p396, %p397
      %p399 = scmp.ne.s32.totalorder %s388, %s389
      %p400 = scmp.eq.s32.totalorder %s40, 0
      %p401 = por %p399, %p400
      %p402 = scmp.ne.s32.totalorder %s388, %s389
      %p403 = scmp.eq.s32.totalorder %s41, 1
      %p404 = por %p402, %p403
      %p406 = scmp.ne.s32.totalorder %s389, %s405
      %p407 = scmp.eq.s32.totalorder %s41, 0
      %p408 = por %p406, %p407
      %p409 = scmp.le.s32.totalorder 1, %s35
      %p410 = scmp.lt.s32.totalorder %s35, 3
      %p411 = pnand %p409, %p410
      %p412 = pneg %p411
      // Predicated region
      $region9: #{tpu_custom_call.1} parent=5 // pred_check
        _
      $region10: #{tpu_custom_call.1} parent=5 // pred_check_branch
        %414 = sbr.rel (%p411) target = $region12
      $region11: #{tpu_custom_call.1} parent=5 // pred_region
        %s415 = ssub.s32 %s35, 1
        // Predicated region
        $region13: #{tpu_custom_call.1} parent=11 // pred_check
          %p416 = pneg %p134
        $region14: #{tpu_custom_call.1} parent=11 // pred_check_branch
          %418 = sbr.rel (%p416) target = $region16
        $region15: #{tpu_custom_call.1} parent=11 // pred_region
          %420 = vsyncadd [#allocation11], 0
          %s421 = sshll.u32 %s3, 4
          %s422 = int_to_ptr.hbm [resolvable:$true] %s421
          %s423 = sshll.u32 [#allocation10], 4
          %s424 = int_to_ptr.vmem [resolvable:$true] %s423
          %429 = dma.hbm_to_vmem [thread:$0]  %s422, 1024, %s424, [#allocation11], 64, 64, 4
        $region16: #{tpu_custom_call.1} parent=11 // pred_fallthru
          _
        // Predicated region
        $region17: #{tpu_custom_call.1} parent=11 // pred_check
          %p430 = pneg %p155
        $region18: #{tpu_custom_call.1} parent=11 // pred_check_branch
          %432 = sbr.rel (%p430) target = $region20
        $region19: #{tpu_custom_call.1} parent=11 // pred_region
          _
        $region20: #{tpu_custom_call.1} parent=11 // pred_fallthru
          _
        // Predicated region
        $region21: #{tpu_custom_call.1} parent=11 // pred_check
          %p433 = pneg %p176
        $region22: #{tpu_custom_call.1} parent=11 // pred_check_branch
          %435 = sbr.rel (%p433) target = $region24
        $region23: #{tpu_custom_call.1} parent=11 // pred_region
          %437 = vsyncadd [#allocation11], 0
          %s438 = sshll.u32 %s5, 4
          %s439 = int_to_ptr.hbm [resolvable:$true] %s438
          %s440 = sshll.u32 [#allocation12], 4
          %s441 = int_to_ptr.vmem [resolvable:$true] %s440
          %446 = dma.hbm_to_vmem [thread:$0]  %s439, 1024, %s441, [#allocation11], 64, 64, 4
        $region24: #{tpu_custom_call.1} parent=11 // pred_fallthru
          _
        // Predicated region
        $region25: #{tpu_custom_call.1} parent=11 // pred_check
          %p447 = pneg %p197
        $region26: #{tpu_custom_call.1} parent=11 // pred_check_branch
          %449 = sbr.rel (%p447) target = $region28
        $region27: #{tpu_custom_call.1} parent=11 // pred_region
          _
        $region28: #{tpu_custom_call.1} parent=11 // pred_fallthru
          _
        // Predicated region
        $region29: #{tpu_custom_call.1} parent=11 // pred_check
          %p450 = pneg %p218
        $region30: #{tpu_custom_call.1} parent=11 // pred_check_branch
          %452 = sbr.rel (%p450) target = $region32
        $region31: #{tpu_custom_call.1} parent=11 // pred_region
          %454 = vsyncadd [#allocation14], 0
          %s455 = sshll.u32 %s7, 4
          %s456 = int_to_ptr.hbm [resolvable:$true] %s455
          %s457 = sshll.u32 [#allocation13], 4
          %s458 = int_to_ptr.vmem [resolvable:$true] %s457
          %463 = dma.hbm_to_vmem [thread:$0]  %s456, 1024, %s458, [#allocation14], 64, 64, 4
        $region32: #{tpu_custom_call.1} parent=11 // pred_fallthru
          _
        // Predicated region
        $region33: #{tpu_custom_call.1} parent=11 // pred_check
          %p464 = pneg %p239
        $region34: #{tpu_custom_call.1} parent=11 // pred_check_branch
          %466 = sbr.rel (%p464) target = $region36
        $region35: #{tpu_custom_call.1} parent=11 // pred_region
          _
        $region36: #{tpu_custom_call.1} parent=11 // pred_fallthru
          _
        // Predicated region
        $region37: #{tpu_custom_call.1} parent=11 // pred_check
          %p467 = pneg %p260
        $region38: #{tpu_custom_call.1} parent=11 // pred_check_branch
          %469 = sbr.rel (%p467) target = $region40
        $region39: #{tpu_custom_call.1} parent=11 // pred_region
          _
        $region40: #{tpu_custom_call.1} parent=11 // pred_fallthru
          _
        // Predicated region
        $region41: #{tpu_custom_call.1} parent=11 // pred_check
          %p470 = pneg %p281
        $region42: #{tpu_custom_call.1} parent=11 // pred_check_branch
          %472 = sbr.rel (%p470) target = $region44
        $region43: #{tpu_custom_call.1} parent=11 // pred_region
          _
        $region44: #{tpu_custom_call.1} parent=11 // pred_fallthru
          _
        // Predicated region
        $region45: #{tpu_custom_call.1} parent=11 // pred_check
          %p473 = pneg %p302
        $region46: #{tpu_custom_call.1} parent=11 // pred_check_branch
          %475 = sbr.rel (%p473) target = $region48
        $region47: #{tpu_custom_call.1} parent=11 // pred_region
          _
        $region48: #{tpu_custom_call.1} parent=11 // pred_fallthru
          _
        // Predicated region
        $region49: #{tpu_custom_call.1} parent=11 // pred_check
          %p476 = pneg %p323
        $region50: #{tpu_custom_call.1} parent=11 // pred_check_branch
          %478 = sbr.rel (%p476) target = $region52
        $region51: #{tpu_custom_call.1} parent=11 // pred_region
          _
        $region52: #{tpu_custom_call.1} parent=11 // pred_fallthru
          _
      $region12: #{tpu_custom_call.1} parent=5 // pred_fallthru
        _
      %p479 = scmp.lt.s32.totalorder %s35, 2
      // Predicated region
      $region53: #{tpu_custom_call.1} parent=5 // pred_check
        %p480 = pneg %p479
      $region54: #{tpu_custom_call.1} parent=5 // pred_check_branch
        %482 = sbr.rel (%p480) target = $region56
      $region55: #{tpu_custom_call.1} parent=5 // pred_region
        // Predicated region
        $region57: #{tpu_custom_call.1} parent=55 // pred_check
          %p483 = pneg %p55
        $region58: #{tpu_custom_call.1} parent=55 // pred_check_branch
          %485 = sbr.rel (%p483) target = $region60
        $region59: #{tpu_custom_call.1} parent=55 // pred_region
          %s486 = sand.u32 %s45, 1
          %s487 = scalar_lea.sflag [#allocation5], %s486
          %s488 = sand.u32 %s45, 1
          %s489 = smul.addr %s488, 32
          %s490 = scalar_lea.vmem [#allocation4], %s489
          %s491 = smul.u32 8, %s35
          %493 = vsyncadd %s487, 0
          %s494 = smul.addr %s491, 4
          %s495 = scalar_lea.hbm %s0, %s494
          %s496 = sshll.u32 %s495, 4
          %s497 = int_to_ptr.hbm [resolvable:$true] %s496
          %s498 = sshll.u32 %s490, 4
          %s499 = int_to_ptr.vmem [resolvable:$true] %s498
          %504 = dma.hbm_to_vmem [thread:$0]  %s497, 512, %s499, %s487, 64, 64, 4
        $region60: #{tpu_custom_call.1} parent=55 // pred_fallthru
          _
        // Predicated region
        $region61: #{tpu_custom_call.1} parent=55 // pred_check
          %p505 = pneg %p81
        $region62: #{tpu_custom_call.1} parent=55 // pred_check_branch
          %507 = sbr.rel (%p505) target = $region64
        $region63: #{tpu_custom_call.1} parent=55 // pred_region
          %s508 = sand.u32 %s35, 1
          %s509 = scalar_lea.sflag [#allocation8], %s508
          %s510 = sand.u32 %s71, 1
          %s511 = smul.addr %s510, 8
          %s512 = scalar_lea.vmem [#allocation7], %s511
          %514 = vsyncadd %s509, 0
          %s515 = smul.addr %s35, 8
          %s516 = scalar_lea.hbm %s1, %s515
          %s518 = sshll.u32 %s516, 4
          %s519 = int_to_ptr.hbm [resolvable:$true] %s518
          %s520 = sshll.u32 %s512, 4
          %s521 = int_to_ptr.vmem [resolvable:$true] %s520
          %523 = dma.hbm_to_vmem [thread:$0]  %s519, 128, %s521, %s509
        $region64: #{tpu_custom_call.1} parent=55 // pred_fallthru
          _
        // Predicated region
        $region65: #{tpu_custom_call.1} parent=55 // pred_check
          %p524 = pneg %p107
        $region66: #{tpu_custom_call.1} parent=55 // pred_check_branch
          %526 = sbr.rel (%p524) target = $region68
        $region67: #{tpu_custom_call.1} parent=55 // pred_region
          %s527 = sand.u32 %s35, 1
          %s528 = scalar_lea.sflag [#allocation8], %s527
          %s529 = sand.u32 %s97, 1
          %s530 = smul.addr %s529, 8
          %s531 = scalar_lea.vmem [#allocation9], %s530
          %533 = vsyncadd %s528, 0
          %s534 = smul.addr %s35, 8
          %s535 = scalar_lea.hbm %s2, %s534
          %s537 = sshll.u32 %s535, 4
          %s538 = int_to_ptr.hbm [resolvable:$true] %s537
          %s539 = sshll.u32 %s531, 4
          %s540 = int_to_ptr.vmem [resolvable:$true] %s539
          %542 = dma.hbm_to_vmem [thread:$0]  %s538, 128, %s540, %s528
        $region68: #{tpu_custom_call.1} parent=55 // pred_fallthru
          _
      $region56: #{tpu_custom_call.1} parent=5 // pred_fallthru
        _
      %p543 = scmp.le.s32.totalorder 1, %s35
      %p544 = scmp.lt.s32.totalorder %s35, 3
      %p545 = pnand %p543, %p544
      %p546 = pneg %p545
      // Predicated region
      $region69: #{tpu_custom_call.1} parent=5 // pred_check
        _
      $region70: #{tpu_custom_call.1} parent=5 // pred_check_branch
        %548 = sbr.rel (%p545) target = $region72
      $region71: #{tpu_custom_call.1} parent=5 // pred_region
        %s549 = ssub.s32 %s35, 1
        %s550 = sand.u32 %s48, 1
        %s551 = scalar_lea.sflag [#allocation5], %s550
        %s552 = sand.u32 %s48, 1
        %s553 = smul.addr %s552, 32
        %s554 = scalar_lea.vmem [#allocation4], %s553
        // Predicated region
        $region73: #{tpu_custom_call.1} parent=71 // pred_check
          %p555 = pneg %p61
        $region74: #{tpu_custom_call.1} parent=71 // pred_check_branch
          %557 = sbr.rel (%p555) target = $region76
        $region75: #{tpu_custom_call.1} parent=71 // pred_region
          %559 = dma.done %s551, 512
        $region76: #{tpu_custom_call.1} parent=71 // pred_fallthru
          _
        %s560 = sand.u32 %s40, 1
        %s561 = scalar_lea.sflag [#allocation8], %s560
        %s562 = sand.u32 %s74, 1
        %s563 = smul.addr %s562, 8
        %s564 = scalar_lea.vmem [#allocation7], %s563
        // Predicated region
        $region77: #{tpu_custom_call.1} parent=71 // pred_check
          %p565 = pneg %p87
        $region78: #{tpu_custom_call.1} parent=71 // pred_check_branch
          %567 = sbr.rel (%p565) target = $region80
        $region79: #{tpu_custom_call.1} parent=71 // pred_region
          %569 = dma.done %s561, 128
        $region80: #{tpu_custom_call.1} parent=71 // pred_fallthru
          _
        %s570 = sand.u32 %s40, 1
        %s571 = scalar_lea.sflag [#allocation8], %s570
        %s572 = sand.u32 %s100, 1
        %s573 = smul.addr %s572, 8
        %s574 = scalar_lea.vmem [#allocation9], %s573
        // Predicated region
        $region81: #{tpu_custom_call.1} parent=71 // pred_check
          %p575 = pneg %p113
        $region82: #{tpu_custom_call.1} parent=71 // pred_check_branch
          %577 = sbr.rel (%p575) target = $region84
        $region83: #{tpu_custom_call.1} parent=71 // pred_region
          %579 = dma.done %s571, 128
        $region84: #{tpu_custom_call.1} parent=71 // pred_fallthru
          _
        // Predicated region
        $region85: #{tpu_custom_call.1} parent=71 // pred_check
          %p580 = pneg %p134
        $region86: #{tpu_custom_call.1} parent=71 // pred_check_branch
          %582 = sbr.rel (%p580) target = $region88
        $region87: #{tpu_custom_call.1} parent=71 // pred_region
          %584 = dma.done [#allocation11], 1024
        $region88: #{tpu_custom_call.1} parent=71 // pred_fallthru
          _
        // Predicated region
        $region89: #{tpu_custom_call.1} parent=71 // pred_check
          %p585 = pneg %p176
        $region90: #{tpu_custom_call.1} parent=71 // pred_check_branch
          %587 = sbr.rel (%p585) target = $region92
        $region91: #{tpu_custom_call.1} parent=71 // pred_region
          %589 = dma.done [#allocation11], 1024
        $region92: #{tpu_custom_call.1} parent=71 // pred_fallthru
          _
        // Predicated region
        $region93: #{tpu_custom_call.1} parent=71 // pred_check
          %p590 = pneg %p218
        $region94: #{tpu_custom_call.1} parent=71 // pred_check_branch
          %592 = sbr.rel (%p590) target = $region96
        $region95: #{tpu_custom_call.1} parent=71 // pred_region
          %594 = dma.done [#allocation14], 1024
        $region96: #{tpu_custom_call.1} parent=71 // pred_fallthru
          _
        %s595 = sand.u32 %s48, 1
        %s596 = scalar_lea.sflag [#allocation5], %s595
        %s597 = sand.u32 %s48, 1
        %s598 = smul.addr %s597, 32
        %s599 = scalar_lea.vmem [#allocation4], %s598
        %p600 = pneg %p61
        %p601 = pneg %p58
        %s602 = sand.u32 %s40, 1
        %s603 = scalar_lea.sflag [#allocation8], %s602
        %s604 = sand.u32 %s74, 1
        %s605 = smul.addr %s604, 8
        %s606 = scalar_lea.vmem [#allocation7], %s605
        %p607 = pneg %p87
        %p608 = pneg %p84
        %s609 = sand.u32 %s40, 1
        %s610 = scalar_lea.sflag [#allocation8], %s609
        %s611 = sand.u32 %s100, 1
        %s612 = smul.addr %s611, 8
        %s613 = scalar_lea.vmem [#allocation9], %s612
        %p614 = pneg %p113
        %p615 = pneg %p110
        %p616 = pneg %p134
        %p617 = pneg %p131
        %p618 = pneg %p155
        %p619 = pneg %p152
        %p620 = pneg %p176
        %p621 = pneg %p173
        %p622 = pneg %p197
        %p623 = pneg %p194
        %p624 = pneg %p218
        %p625 = pneg %p215
        %p626 = pneg %p239
        %p627 = pneg %p236
        %p628 = pneg %p260
        %p629 = pneg %p257
        %p630 = pneg %p281
        %p631 = pneg %p278
        %p632 = pneg %p302
        %p633 = pneg %p299
        %p634 = pneg %p323
        %p635 = pneg %p320
        %p636 = pneg %p349
        %p637 = pneg %p346
        %s638 = sand.u32 %s336, 1
        %s639 = scalar_lea.sflag [#allocation6], %s638
        %s640 = sand.u32 %s336, 1
        %s641 = smul.addr %s640, 8
        %s642 = scalar_lea.vmem [#allocation15], %s641
        %p643 = pneg %p375
        %p644 = pneg %p372
        %p645 = scmp.lt.s32.totalorder %s40, 1
        %s646 = scalar_select %p645, %s40, 1
        %s647 = smul.addr %s646, 8
        %s648 = scalar_lea.vmem %s14, %s647
        %p649 = pneg %p401
        %p650 = pneg %p398
        %p651 = scmp.lt.s32.totalorder %s40, 1
        %s652 = scalar_select %p651, %s40, 1
        %s653 = smul.addr %s652, 8
        %s654 = scalar_lea.vmem %s15, %s653
        %s655 = smul.u32 8, %s40
        %p656 = scmp.lt.s32.totalorder %s40, 1
        %s657 = scalar_select %p656, %s40, 1
        %s658 = smul.addr %s657, 8
        %s659 = scalar_lea.vmem %s14, %s658
        %p660 = scmp.lt.s32.totalorder %s40, 1
        %s661 = scalar_select %p660, %s40, 1
        %s662 = smul.addr %s661, 8
        %s663 = scalar_lea.vmem %s15, %s662
        %v664 = vld [vmem:[%s554] sm:$0xf]
        %v665 = vld [vmem:[%s554 + $0x4] sm:$0xf]
        %v666 = vld [vmem:[%s554 + $0x8] sm:$0xf]
        %v667 = vld [vmem:[%s554 + $0xc] sm:$0xf]
        %v668 = vld [vmem:[%s554 + $0x10] sm:$0xf]
        %v669 = vld [vmem:[%s554 + $0x14] sm:$0xf]
        %v670 = vld [vmem:[%s554 + $0x18] sm:$0xf]
        %v671 = vld [vmem:[%s554 + $0x1c] sm:$0xf]
        %v672 = vld [vmem:[%s564] sm:$0xff]
        %v673 = vld [vmem:[%s574] sm:$0xff]
        %v674 = vld [vmem:[#allocation10] sm:$0xf]
        %v675 = vld [vmem:[#allocation10 + $0x4] sm:$0xf]
        %v676 = vld [vmem:[#allocation10 + $0x8] sm:$0xf]
        %v677 = vld [vmem:[#allocation10 + $0xc] sm:$0xf]
        %v678 = vld [vmem:[#allocation10 + $0x10] sm:$0xf]
        %v679 = vld [vmem:[#allocation10 + $0x14] sm:$0xf]
        %v680 = vld [vmem:[#allocation10 + $0x18] sm:$0xf]
        %v681 = vld [vmem:[#allocation10 + $0x1c] sm:$0xf]
        %v682 = vld [vmem:[#allocation10 + $0x20] sm:$0xf]
        %v683 = vld [vmem:[#allocation10 + $0x24] sm:$0xf]
        %v684 = vld [vmem:[#allocation10 + $0x28] sm:$0xf]
        %v685 = vld [vmem:[#allocation10 + $0x2c] sm:$0xf]
        %v686 = vld [vmem:[#allocation10 + $0x30] sm:$0xf]
        %v687 = vld [vmem:[#allocation10 + $0x34] sm:$0xf]
        %v688 = vld [vmem:[#allocation10 + $0x38] sm:$0xf]
        %v689 = vld [vmem:[#allocation10 + $0x3c] sm:$0xf]
        %v690 = vld [vmem:[%s4] sm:$0x1]
        %v692 = vperm.slane %v690, 0
        %v702 = vunpack.c.l.b16 %v664
        %v703 = vunpack.c.l.b16 %v665
        %v704 = vunpack.c.l.b16 %v666
        %v705 = vunpack.c.l.b16 %v667
        %v706 = vunpack.c.l.b16 %v668
        %v707 = vunpack.c.l.b16 %v669
        %v708 = vunpack.c.l.b16 %v670
        %v709 = vunpack.c.l.b16 %v671
        %v710 = vpack.c.b16 %v703, %v702
        %v711 = vpack.c.b16 %v705, %v704
        %v712 = vpack.c.b16 %v707, %v706
        %v713 = vpack.c.b16 %v709, %v708
        %v734 = vunpack.c.l.b16 %v674
        %v735 = vunpack.c.l.b16 %v675
        %v736 = vunpack.c.l.b16 %v676
        %v737 = vunpack.c.l.b16 %v677
        %v738 = vunpack.c.l.b16 %v678
        %v739 = vunpack.c.l.b16 %v679
        %v740 = vunpack.c.l.b16 %v680
        %v741 = vunpack.c.l.b16 %v681
        %v742 = vunpack.c.l.b16 %v682
        %v743 = vunpack.c.l.b16 %v683
        %v744 = vunpack.c.l.b16 %v684
        %v745 = vunpack.c.l.b16 %v685
        %v746 = vunpack.c.l.b16 %v686
        %v747 = vunpack.c.l.b16 %v687
        %v748 = vunpack.c.l.b16 %v688
        %v749 = vunpack.c.l.b16 %v689
        %v750 = vpack.c.b16 %v735, %v734
        %v751 = vpack.c.b16 %v737, %v736
        %v752 = vpack.c.b16 %v739, %v738
        %v753 = vpack.c.b16 %v741, %v740
        %v754 = vpack.c.b16 %v743, %v742
        %v755 = vpack.c.b16 %v745, %v744
        %v756 = vpack.c.b16 %v747, %v746
        %v757 = vpack.c.b16 %v749, %v748
        %766 = vmatpush.bf16.msra.mxu0 %v757
        %767 = vmatpush.bf16.msra.mxu0 %v756
        %768 = vmatpush.bf16.msra.mxu0 %v755
        %769 = vmatpush.bf16.msra.mxu0 %v754
        %770 = vmatpush.bf16.msra.mxu0 %v753
        %771 = vmatpush.bf16.msra.mxu0 %v752
        %772 = vmatpush.bf16.msra.mxu0 %v751
        %773 = vmatpush.bf16.msra.mxu0 %v750
        %774 = vmatmul.bf16.gmra.mxu0 %v710
        %v775 = vpop.f32.mrf.mxu0
        %v776 = vadd.f32 %v692, %v775
        %v777 = vpop.f32.mrf.mxu0
        %v778 = vadd.f32 %v692, %v777
        %779 = vmatmul.bf16.gmra.mxu0 %v711
        %v780 = vpop.f32.mrf.mxu0
        %v781 = vadd.f32 %v692, %v780
        %v782 = vpop.f32.mrf.mxu0
        %v783 = vadd.f32 %v692, %v782
        %784 = vmatmul.bf16.gmra.mxu0 %v712
        %v785 = vpop.f32.mrf.mxu0
        %v786 = vadd.f32 %v692, %v785
        %v787 = vpop.f32.mrf.mxu0
        %v788 = vadd.f32 %v692, %v787
        %789 = vmatmul.bf16.gmra.mxu0 %v713
        %v790 = vpop.f32.mrf.mxu0
        %v791 = vadd.f32 %v692, %v790
        %v792 = vpop.f32.mrf.mxu0
        %v793 = vadd.f32 %v692, %v792
        %794 = vdwg.mxu0
        %v795 = vpack.c.bf16 %v672, %v672
        %v796 = vld [vmem:[#allocation12] sm:$0xf]
        %v797 = vld [vmem:[#allocation12 + $0x4] sm:$0xf]
        %v798 = vld [vmem:[#allocation12 + $0x8] sm:$0xf]
        %v799 = vld [vmem:[#allocation12 + $0xc] sm:$0xf]
        %v800 = vld [vmem:[#allocation12 + $0x10] sm:$0xf]
        %v801 = vld [vmem:[#allocation12 + $0x14] sm:$0xf]
        %v802 = vld [vmem:[#allocation12 + $0x18] sm:$0xf]
        %v803 = vld [vmem:[#allocation12 + $0x1c] sm:$0xf]
        %v804 = vld [vmem:[#allocation12 + $0x20] sm:$0xf]
        %v805 = vld [vmem:[#allocation12 + $0x24] sm:$0xf]
        %v806 = vld [vmem:[#allocation12 + $0x28] sm:$0xf]
        %v807 = vld [vmem:[#allocation12 + $0x2c] sm:$0xf]
        %v808 = vld [vmem:[#allocation12 + $0x30] sm:$0xf]
        %v809 = vld [vmem:[#allocation12 + $0x34] sm:$0xf]
        %v810 = vld [vmem:[#allocation12 + $0x38] sm:$0xf]
        %v811 = vld [vmem:[#allocation12 + $0x3c] sm:$0xf]
        %v812 = vld [vmem:[%s6] sm:$0x1]
        %v814 = vperm.slane %v812, 0
        %v832 = vunpack.c.l.b16 %v796
        %v833 = vunpack.c.l.b16 %v797
        %v834 = vunpack.c.l.b16 %v798
        %v835 = vunpack.c.l.b16 %v799
        %v836 = vunpack.c.l.b16 %v800
        %v837 = vunpack.c.l.b16 %v801
        %v838 = vunpack.c.l.b16 %v802
        %v839 = vunpack.c.l.b16 %v803
        %v840 = vunpack.c.l.b16 %v804
        %v841 = vunpack.c.l.b16 %v805
        %v842 = vunpack.c.l.b16 %v806
        %v843 = vunpack.c.l.b16 %v807
        %v844 = vunpack.c.l.b16 %v808
        %v845 = vunpack.c.l.b16 %v809
        %v846 = vunpack.c.l.b16 %v810
        %v847 = vunpack.c.l.b16 %v811
        %v848 = vpack.c.b16 %v833, %v832
        %v849 = vpack.c.b16 %v835, %v834
        %v850 = vpack.c.b16 %v837, %v836
        %v851 = vpack.c.b16 %v839, %v838
        %v852 = vpack.c.b16 %v841, %v840
        %v853 = vpack.c.b16 %v843, %v842
        %v854 = vpack.c.b16 %v845, %v844
        %v855 = vpack.c.b16 %v847, %v846
        %864 = vmatpush.bf16.msra.mxu0 %v855
        %865 = vmatpush.bf16.msra.mxu0 %v854
        %866 = vmatpush.bf16.msra.mxu0 %v853
        %867 = vmatpush.bf16.msra.mxu0 %v852
        %868 = vmatpush.bf16.msra.mxu0 %v851
        %869 = vmatpush.bf16.msra.mxu0 %v850
        %870 = vmatpush.bf16.msra.mxu0 %v849
        %871 = vmatpush.bf16.msra.mxu0 %v848
        %872 = vmatmul.bf16.gmra.mxu0 %v795
        %v873 = vpop.f32.mrf.mxu0
        %v874 = vadd.f32 %v814, %v873
        %v875 = vpop.f32.mrf.mxu0
        %876 = vdwg.mxu0
        %v877 = vpack.c.bf16 %v673, %v673
        %v878 = vld [vmem:[#allocation13] sm:$0xf]
        %v879 = vld [vmem:[#allocation13 + $0x4] sm:$0xf]
        %v880 = vld [vmem:[#allocation13 + $0x8] sm:$0xf]
        %v881 = vld [vmem:[#allocation13 + $0xc] sm:$0xf]
        %v882 = vld [vmem:[#allocation13 + $0x10] sm:$0xf]
        %v883 = vld [vmem:[#allocation13 + $0x14] sm:$0xf]
        %v884 = vld [vmem:[#allocation13 + $0x18] sm:$0xf]
        %v885 = vld [vmem:[#allocation13 + $0x1c] sm:$0xf]
        %v886 = vld [vmem:[#allocation13 + $0x20] sm:$0xf]
        %v887 = vld [vmem:[#allocation13 + $0x24] sm:$0xf]
        %v888 = vld [vmem:[#allocation13 + $0x28] sm:$0xf]
        %v889 = vld [vmem:[#allocation13 + $0x2c] sm:$0xf]
        %v890 = vld [vmem:[#allocation13 + $0x30] sm:$0xf]
        %v891 = vld [vmem:[#allocation13 + $0x34] sm:$0xf]
        %v892 = vld [vmem:[#allocation13 + $0x38] sm:$0xf]
        %v893 = vld [vmem:[#allocation13 + $0x3c] sm:$0xf]
        %v894 = vld [vmem:[%s8] sm:$0x1]
        %v896 = vperm.slane %v894, 0
        %v914 = vunpack.c.l.b16 %v878
        %v915 = vunpack.c.l.b16 %v879
        %v916 = vunpack.c.l.b16 %v880
        %v917 = vunpack.c.l.b16 %v881
        %v918 = vunpack.c.l.b16 %v882
        %v919 = vunpack.c.l.b16 %v883
        %v920 = vunpack.c.l.b16 %v884
        %v921 = vunpack.c.l.b16 %v885
        %v922 = vunpack.c.l.b16 %v886
        %v923 = vunpack.c.l.b16 %v887
        %v924 = vunpack.c.l.b16 %v888
        %v925 = vunpack.c.l.b16 %v889
        %v926 = vunpack.c.l.b16 %v890
        %v927 = vunpack.c.l.b16 %v891
        %v928 = vunpack.c.l.b16 %v892
        %v929 = vunpack.c.l.b16 %v893
        %v930 = vpack.c.b16 %v915, %v914
        %v931 = vpack.c.b16 %v917, %v916
        %v932 = vpack.c.b16 %v919, %v918
        %v933 = vpack.c.b16 %v921, %v920
        %v934 = vpack.c.b16 %v923, %v922
        %v935 = vpack.c.b16 %v925, %v924
        %v936 = vpack.c.b16 %v927, %v926
        %v937 = vpack.c.b16 %v929, %v928
        %946 = vmatpush.bf16.msra.mxu0 %v937
        %947 = vmatpush.bf16.msra.mxu0 %v936
        %948 = vmatpush.bf16.msra.mxu0 %v935
        %949 = vmatpush.bf16.msra.mxu0 %v934
        %950 = vmatpush.bf16.msra.mxu0 %v933
        %951 = vmatpush.bf16.msra.mxu0 %v932
        %952 = vmatpush.bf16.msra.mxu0 %v931
        %953 = vmatpush.bf16.msra.mxu0 %v930
        %954 = vmatmul.bf16.gmra.mxu0 %v877
        %v955 = vpop.f32.mrf.mxu0
        %v956 = vadd.f32 %v896, %v955
        %v957 = vpop.f32.mrf.mxu0
        %958 = vdwg.mxu0
        %v960 = vrot.slane %v874, 1
        %v961 = vrot.slane %v874, 2
        %v962 = vrot.slane %v874, 3
        %v963 = vrot.slane %v874, 4
        %v964 = vrot.slane %v874, 5
        %v965 = vrot.slane %v874, 6
        %v966 = vrot.slane %v874, 7
        %v967 = vperm.slane %v874, 0
        %v968 = vperm.slane %v960, 0
        %v969 = vperm.slane %v961, 0
        %v970 = vperm.slane %v962, 0
        %v971 = vperm.slane %v963, 0
        %v972 = vperm.slane %v964, 0
        %v973 = vperm.slane %v965, 0
        %v974 = vperm.slane %v966, 0
        %v983 = vadd.f32 %v776, %v967
        %v984 = vadd.f32 %v778, %v968
        %v985 = vadd.f32 %v781, %v969
        %v986 = vadd.f32 %v783, %v970
        %v987 = vadd.f32 %v786, %v971
        %v988 = vadd.f32 %v788, %v972
        %v989 = vadd.f32 %v791, %v973
        %v990 = vadd.f32 %v793, %v974
        %v991 = vtanh.pop %v983
        %v992 = vtanh.pop %v984
        %v993 = vtanh.pop %v985
        %v994 = vtanh.pop %v986
        %v995 = vtanh.pop %v987
        %v996 = vtanh.pop %v988
        %v997 = vtanh.pop %v989
        %v998 = vtanh.pop %v990
        %v999 = vld [vmem:[%s9] sm:$0x1]
        %v1001 = vperm.slane %v999, 0
        %v1003 = vmul.f32 %v991, %v1001
        %v1004 = vmul.f32 %v992, %v1001
        %v1005 = vmul.f32 %v993, %v1001
        %v1006 = vmul.f32 %v994, %v1001
        %v1007 = vmul.f32 %v995, %v1001
        %v1008 = vmul.f32 %v996, %v1001
        %v1009 = vmul.f32 %v997, %v1001
        %v1010 = vmul.f32 %v998, %v1001
        %1011 = vadd.xlane.f32.xlu0 %v1003
        %v1012 = vpop.xlane.xlu0 %1011
        %1013 = vadd.xlane.f32.xlu0 %v1004
        %v1014 = vpop.xlane.xlu0 %1013
        %1015 = vadd.xlane.f32.xlu0 %v1005
        %v1016 = vpop.xlane.xlu0 %1015
        %1017 = vadd.xlane.f32.xlu0 %v1006
        %v1018 = vpop.xlane.xlu0 %1017
        %1019 = vadd.xlane.f32.xlu0 %v1007
        %v1020 = vpop.xlane.xlu0 %1019
        %1021 = vadd.xlane.f32.xlu0 %v1008
        %v1022 = vpop.xlane.xlu0 %1021
        %1023 = vadd.xlane.f32.xlu0 %v1009
        %v1024 = vpop.xlane.xlu0 %1023
        %1025 = vadd.xlane.f32.xlu0 %v1010
        %v1026 = vpop.xlane.xlu0 %1025
        %s1027 = sld [smem:[#allocation2]]
        %v1028 = vstv %s1027
        %v1029 = vadd.f32 %v1012, %v1028
        %v1030 = vadd.f32 %v1014, %v1028
        %v1031 = vadd.f32 %v1016, %v1028
        %v1032 = vadd.f32 %v1018, %v1028
        %v1033 = vadd.f32 %v1020, %v1028
        %v1034 = vadd.f32 %v1022, %v1028
        %v1035 = vadd.f32 %v1024, %v1028
        %v1036 = vadd.f32 %v1026, %v1028
        %v1037 = vadd.f32 %v956, %v874
        %v1038 = vtanh.pop %v1037
        %v1039 = vld [vmem:[%s11] sm:$0x1]
        %v1041 = vperm.slane %v1039, 0
        %v1043 = vmul.f32 %v1038, %v1041
        %1044 = vadd.xlane.f32.xlu0 %v1043
        %v1045 = vpop.xlane.xlu0 %1044
        %s1046 = sld [smem:[#allocation3]]
        %v1047 = vstv %s1046
        %v1048 = vadd.f32 %v1045, %v1047
        %v1057 = vlaneseq
        %v1058 = vand.u32 %v1057, 127
        %v1059 = vperm.slane %v1029, %v1058
        %v1060 = vperm.slane %v1030, %v1058
        %v1061 = vperm.slane %v1031, %v1058
        %v1062 = vperm.slane %v1032, %v1058
        %v1063 = vperm.slane %v1033, %v1058
        %v1064 = vperm.slane %v1034, %v1058
        %v1065 = vperm.slane %v1035, %v1058
        %v1066 = vperm.slane %v1036, %v1058
        %vm1067 = vcmask 1041409
        %v1068 = vsel %vm1067, %v1060, %v1059
        %vm1069 = vcmask 1042434
        %v1070 = vsel %vm1069, %v1061, %v1068
        %vm1071 = vcmask 1043459
        %v1072 = vsel %vm1071, %v1062, %v1070
        %vm1073 = vcmask 1044484
        %v1074 = vsel %vm1073, %v1063, %v1072
        %vm1075 = vcmask 1045509
        %v1076 = vsel %vm1075, %v1064, %v1074
        %vm1077 = vcmask 1046534
        %v1078 = vsel %vm1077, %v1065, %v1076
        %vm1079 = vcmask 1047559
        %v1080 = vsel %vm1079, %v1066, %v1078
        %vm1082 = vcmask 64512
        %v1083 = vsel %vm1082, %v1080, -inf
        %1084 = vmax.xlane.f32.xlu0 %v1083
        %v1085 = vpop.xlane.xlu0 %1084
        %v1087 = vperm.slane %v1085, 0
        %v1088 = vperm.slane %v1085, 1
        %v1089 = vperm.slane %v1085, 2
        %v1090 = vperm.slane %v1085, 3
        %v1091 = vperm.slane %v1085, 4
        %v1092 = vperm.slane %v1085, 5
        %v1093 = vperm.slane %v1085, 6
        %v1094 = vperm.slane %v1085, 7
        %v1103 = vsub.f32 %v1029, %v1087
        %v1104 = vsub.f32 %v1030, %v1088
        %v1105 = vsub.f32 %v1031, %v1089
        %v1106 = vsub.f32 %v1032, %v1090
        %v1107 = vsub.f32 %v1033, %v1091
        %v1108 = vsub.f32 %v1034, %v1092
        %v1109 = vsub.f32 %v1035, %v1093
        %v1110 = vsub.f32 %v1036, %v1094
        %v1111 = vmul.f32 %v1103, 1.442695
        %v1112 = vpow.pop %v1111
        %v1113 = vmul.f32 %v1104, 1.442695
        %v1114 = vpow.pop %v1113
        %v1115 = vmul.f32 %v1105, 1.442695
        %v1116 = vpow.pop %v1115
        %v1117 = vmul.f32 %v1106, 1.442695
        %v1118 = vpow.pop %v1117
        %v1119 = vmul.f32 %v1107, 1.442695
        %v1120 = vpow.pop %v1119
        %v1121 = vmul.f32 %v1108, 1.442695
        %v1122 = vpow.pop %v1121
        %v1123 = vmul.f32 %v1109, 1.442695
        %v1124 = vpow.pop %v1123
        %v1125 = vmul.f32 %v1110, 1.442695
        %v1126 = vpow.pop %v1125
        %1135 = vset.pattern.permute.xlu0 0
        %1136 = vperm.xlu0 %1135, %v1112
        %v1137 = vpop.permute.xlu0 %1136
        %1138 = vset.pattern.permute.xlu0 0
        %1139 = vperm.xlu0 %1138, %v1114
        %v1140 = vpop.permute.xlu0 %1139
        %1141 = vset.pattern.permute.xlu0 0
        %1142 = vperm.xlu0 %1141, %v1116
        %v1143 = vpop.permute.xlu0 %1142
        %1144 = vset.pattern.permute.xlu0 0
        %1145 = vperm.xlu0 %1144, %v1118
        %v1146 = vpop.permute.xlu0 %1145
        %1147 = vset.pattern.permute.xlu0 0
        %1148 = vperm.xlu0 %1147, %v1120
        %v1149 = vpop.permute.xlu0 %1148
        %1150 = vset.pattern.permute.xlu0 0
        %1151 = vperm.xlu0 %1150, %v1122
        %v1152 = vpop.permute.xlu0 %1151
        %1153 = vset.pattern.permute.xlu0 0
        %1154 = vperm.xlu0 %1153, %v1124
        %v1155 = vpop.permute.xlu0 %1154
        %1156 = vset.pattern.permute.xlu0 0
        %1157 = vperm.xlu0 %1156, %v1126
        %v1158 = vpop.permute.xlu0 %1157
        %v1159 = vperm.slane %v1137, %v1058
        %v1160 = vperm.slane %v1140, %v1058
        %v1161 = vperm.slane %v1143, %v1058
        %v1162 = vperm.slane %v1146, %v1058
        %v1163 = vperm.slane %v1149, %v1058
        %v1164 = vperm.slane %v1152, %v1058
        %v1165 = vperm.slane %v1155, %v1058
        %v1166 = vperm.slane %v1158, %v1058
        %v1167 = vsel %vm1067, %v1160, %v1159
        %v1168 = vsel %vm1069, %v1161, %v1167
        %v1169 = vsel %vm1071, %v1162, %v1168
        %v1170 = vsel %vm1073, %v1163, %v1169
        %v1171 = vsel %vm1075, %v1164, %v1170
        %v1172 = vsel %vm1077, %v1165, %v1171
        %v1173 = vsel %vm1079, %v1166, %v1172
        %v1175 = vsel %vm1082, %v1173, 0.0
        %1176 = vadd.xlane.f32.xlu0 %v1175
        %v1177 = vpop.xlane.xlu0 %1176
        %v1178 = vrcp.pop %v1177
        %v1180 = vperm.slane %v1178, 0
        %v1181 = vperm.slane %v1178, 1
        %v1182 = vperm.slane %v1178, 2
        %v1183 = vperm.slane %v1178, 3
        %v1184 = vperm.slane %v1178, 4
        %v1185 = vperm.slane %v1178, 5
        %v1186 = vperm.slane %v1178, 6
        %v1187 = vperm.slane %v1178, 7
        %v1196 = vmul.f32 %v1112, %v1180
        %v1197 = vmul.f32 %v1114, %v1181
        %v1198 = vmul.f32 %v1116, %v1182
        %v1199 = vmul.f32 %v1118, %v1183
        %v1200 = vmul.f32 %v1120, %v1184
        %v1201 = vmul.f32 %v1122, %v1185
        %v1202 = vmul.f32 %v1124, %v1186
        %v1203 = vmul.f32 %v1126, %v1187
        %v1204 = vunpack.c.l.bf16 %v664
        %v1205 = vunpack.c.l.bf16 %v665
        %v1206 = vunpack.c.l.bf16 %v666
        %v1207 = vunpack.c.l.bf16 %v667
        %v1208 = vunpack.c.l.bf16 %v668
        %v1209 = vunpack.c.l.bf16 %v669
        %v1210 = vunpack.c.l.bf16 %v670
        %v1211 = vunpack.c.l.bf16 %v671
        %1213 = vset.pattern.permute.xlu0 0
        %1214 = vperm.xlu0 %1213, %v1196
        %v1215 = vpop.permute.xlu0 %1214
        %1218 = vset.pattern.permute.xlu0 0
        %1219 = vperm.xlu0 %1218, %v1197
        %v1220 = vpop.permute.xlu0 %1219
        %1223 = vset.pattern.permute.xlu0 0
        %1224 = vperm.xlu0 %1223, %v1198
        %v1225 = vpop.permute.xlu0 %1224
        %1228 = vset.pattern.permute.xlu0 0
        %1229 = vperm.xlu0 %1228, %v1199
        %v1230 = vpop.permute.xlu0 %1229
        %1233 = vset.pattern.permute.xlu0 0
        %1234 = vperm.xlu0 %1233, %v1200
        %v1235 = vpop.permute.xlu0 %1234
        %1238 = vset.pattern.permute.xlu0 0
        %1239 = vperm.xlu0 %1238, %v1201
        %v1240 = vpop.permute.xlu0 %1239
        %1243 = vset.pattern.permute.xlu0 0
        %1244 = vperm.xlu0 %1243, %v1202
        %v1245 = vpop.permute.xlu0 %1244
        %1248 = vset.pattern.permute.xlu0 0
        %1249 = vperm.xlu0 %1248, %v1203
        %v1250 = vpop.permute.xlu0 %1249
        %v1252 = vmul.f32 %v1215, %v1204
        %v1253 = vmul.f32 %v1220, %v1205
        %v1254 = vmul.f32 %v1225, %v1206
        %v1255 = vmul.f32 %v1230, %v1207
        %v1256 = vmul.f32 %v1235, %v1208
        %v1257 = vmul.f32 %v1240, %v1209
        %v1258 = vmul.f32 %v1245, %v1210
        %v1259 = vmul.f32 %v1250, %v1211
        %v1260 = vrot.slane %v1252, 4
        %v1261 = vadd.f32 %v1252, %v1260
        %v1262 = vrot.slane %v1261, 2
        %v1263 = vadd.f32 %v1261, %v1262
        %v1264 = vrot.slane %v1263, 1
        %v1265 = vadd.f32 %v1263, %v1264
        %v1266 = vrot.slane %v1253, 4
        %v1267 = vadd.f32 %v1253, %v1266
        %v1268 = vrot.slane %v1267, 2
        %v1269 = vadd.f32 %v1267, %v1268
        %v1270 = vrot.slane %v1269, 1
        %v1271 = vadd.f32 %v1269, %v1270
        %v1272 = vrot.slane %v1254, 4
        %v1273 = vadd.f32 %v1254, %v1272
        %v1274 = vrot.slane %v1273, 2
        %v1275 = vadd.f32 %v1273, %v1274
        %v1276 = vrot.slane %v1275, 1
        %v1277 = vadd.f32 %v1275, %v1276
        %v1278 = vrot.slane %v1255, 4
        %v1279 = vadd.f32 %v1255, %v1278
        %v1280 = vrot.slane %v1279, 2
        %v1281 = vadd.f32 %v1279, %v1280
        %v1282 = vrot.slane %v1281, 1
        %v1283 = vadd.f32 %v1281, %v1282
        %v1284 = vrot.slane %v1256, 4
        %v1285 = vadd.f32 %v1256, %v1284
        %v1286 = vrot.slane %v1285, 2
        %v1287 = vadd.f32 %v1285, %v1286
        %v1288 = vrot.slane %v1287, 1
        %v1289 = vadd.f32 %v1287, %v1288
        %v1290 = vrot.slane %v1257, 4
        %v1291 = vadd.f32 %v1257, %v1290
        %v1292 = vrot.slane %v1291, 2
        %v1293 = vadd.f32 %v1291, %v1292
        %v1294 = vrot.slane %v1293, 1
        %v1295 = vadd.f32 %v1293, %v1294
        %v1296 = vrot.slane %v1258, 4
        %v1297 = vadd.f32 %v1258, %v1296
        %v1298 = vrot.slane %v1297, 2
        %v1299 = vadd.f32 %v1297, %v1298
        %v1300 = vrot.slane %v1299, 1
        %v1301 = vadd.f32 %v1299, %v1300
        %v1302 = vrot.slane %v1259, 4
        %v1303 = vadd.f32 %v1259, %v1302
        %v1304 = vrot.slane %v1303, 2
        %v1305 = vadd.f32 %v1303, %v1304
        %v1306 = vrot.slane %v1305, 1
        %v1307 = vadd.f32 %v1305, %v1306
        %v1308 = vmax.f32 %v1085, %v1048
        %v1309 = vsub.f32 %v1048, %v1308
        %v1310 = vmul.f32 %v1309, 1.442695
        %v1311 = vpow.pop %v1310
        %v1312 = vsub.f32 %v1085, %v1308
        %v1313 = vmul.f32 %v1312, 1.442695
        %v1314 = vpow.pop %v1313
        %v1315 = vmul.f32 %v1314, %v1177
        %v1316 = vadd.f32 %v1315, %v1311
        %v1317 = vrcp.pop %v1316
        %v1318 = vmul.f32 %v1311, %v1317
        %v1319 = vmul.f32 %v1318, %v673
        %v1320 = vsub.f32 1.0, %v1318
        %v1329 = vsel %vm1067, %v1271, %v1265
        %v1330 = vsel %vm1069, %v1277, %v1329
        %v1331 = vsel %vm1071, %v1283, %v1330
        %v1332 = vsel %vm1073, %v1289, %v1331
        %v1333 = vsel %vm1075, %v1295, %v1332
        %v1334 = vsel %vm1077, %v1301, %v1333
        %v1335 = vsel %vm1079, %v1307, %v1334
        %v1337 = vmul.f32 %v1320, %v1335
        %v1338 = vadd.f32 %v1319, %v1337
        %1339 = vst [vmem:[%s642] sm:$0xff] %v1338
        %v1340 = vperm.slane %v1215, %v1058
        %v1341 = vperm.slane %v1220, %v1058
        %v1342 = vperm.slane %v1225, %v1058
        %v1343 = vperm.slane %v1230, %v1058
        %v1344 = vperm.slane %v1235, %v1058
        %v1345 = vperm.slane %v1240, %v1058
        %v1346 = vperm.slane %v1245, %v1058
        %v1347 = vperm.slane %v1250, %v1058
        %v1348 = vsel %vm1067, %v1341, %v1340
        %v1349 = vsel %vm1069, %v1342, %v1348
        %v1350 = vsel %vm1071, %v1343, %v1349
        %v1351 = vsel %vm1073, %v1344, %v1350
        %v1352 = vsel %vm1075, %v1345, %v1351
        %v1353 = vsel %vm1077, %v1346, %v1352
        %v1354 = vsel %vm1079, %v1347, %v1353
        %1356 = vst.msk [vmem:[%s659] sm:$0xff] %vm1082, %v1354
        %vm1357 = vcmask 7168
        %1358 = vst.msk [vmem:[%s663] sm:$0xff] %vm1357, %v1318
        %s1359 = sand.u32 %s336, 1
        %s1360 = scalar_lea.sflag [#allocation6], %s1359
        %s1361 = sand.u32 %s336, 1
        %s1362 = smul.addr %s1361, 8
        %s1363 = scalar_lea.vmem [#allocation15], %s1362
        %p1364 = scmp.lt.s32.totalorder %s40, 1
        %s1365 = scalar_select %p1364, %s40, 1
        %s1366 = smul.addr %s1365, 8
        %s1367 = scalar_lea.vmem %s14, %s1366
        %p1368 = scmp.lt.s32.totalorder %s40, 1
        %s1369 = scalar_select %p1368, %s40, 1
        %s1370 = smul.addr %s1369, 8
        %s1371 = scalar_lea.vmem %s15, %s1370
        // Predicated region
        $region97: #{tpu_custom_call.1} parent=71 // pred_check
          %p1372 = pneg %p346
        $region98: #{tpu_custom_call.1} parent=71 // pred_check_branch
          %1374 = sbr.rel (%p1372) target = $region100
        $region99: #{tpu_custom_call.1} parent=71 // pred_region
          %1376 = vsyncadd %s1360, 0
          %s1377 = smul.addr %s40, 8
          %s1378 = scalar_lea.hbm %s13, %s1377
          %s1380 = sshll.u32 %s1363, 4
          %s1381 = int_to_ptr.vmem [resolvable:$true] %s1380
          %s1382 = sshll.u32 %s1378, 4
          %s1383 = int_to_ptr.hbm [resolvable:$true] %s1382
          %1385 = dma.vmem_to_hbm [thread:$0]  %s1381, 128, %s1383, %s1360
        $region100: #{tpu_custom_call.1} parent=71 // pred_fallthru
          _
        // Predicated region
        $region101: #{tpu_custom_call.1} parent=71 // pred_check
          %p1386 = pneg %p372
        $region102: #{tpu_custom_call.1} parent=71 // pred_check_branch
          %1388 = sbr.rel (%p1386) target = $region104
        $region103: #{tpu_custom_call.1} parent=71 // pred_region
          _
        $region104: #{tpu_custom_call.1} parent=71 // pred_fallthru
          _
        // Predicated region
        $region105: #{tpu_custom_call.1} parent=71 // pred_check
          %p1389 = pneg %p398
        $region106: #{tpu_custom_call.1} parent=71 // pred_check_branch
          %1391 = sbr.rel (%p1389) target = $region108
        $region107: #{tpu_custom_call.1} parent=71 // pred_region
          _
        $region108: #{tpu_custom_call.1} parent=71 // pred_fallthru
          _
      $region72: #{tpu_custom_call.1} parent=5 // pred_fallthru
        _
      %p1392 = scmp.le.s32.totalorder 2, %s35
      // Predicated region
      $region109: #{tpu_custom_call.1} parent=5 // pred_check
        %p1393 = pneg %p1392
      $region110: #{tpu_custom_call.1} parent=5 // pred_check_branch
        %1395 = sbr.rel (%p1393) target = $region112
      $region111: #{tpu_custom_call.1} parent=5 // pred_region
        %s1396 = ssub.s32 %s35, 2
        // Predicated region
        $region113: #{tpu_custom_call.1} parent=111 // pred_check
          %p1397 = pneg %p352
        $region114: #{tpu_custom_call.1} parent=111 // pred_check_branch
          %1399 = sbr.rel (%p1397) target = $region116
        $region115: #{tpu_custom_call.1} parent=111 // pred_region
          %s1400 = sand.u32 %s337, 1
          %s1401 = scalar_lea.sflag [#allocation6], %s1400
          %s1402 = sand.u32 %s337, 1
          %s1403 = smul.addr %s1402, 8
          %s1404 = scalar_lea.vmem [#allocation15], %s1403
          %1406 = dma.done %s1401, 128
        $region116: #{tpu_custom_call.1} parent=111 // pred_fallthru
          _
        // Predicated region
        $region117: #{tpu_custom_call.1} parent=111 // pred_check
          %p1407 = pneg %p378
        $region118: #{tpu_custom_call.1} parent=111 // pred_check_branch
          %1409 = sbr.rel (%p1407) target = $region120
        $region119: #{tpu_custom_call.1} parent=111 // pred_region
          %p1410 = scmp.lt.s32.totalorder %s41, 1
          %s1411 = scalar_select %p1410, %s41, 1
          %s1412 = smul.addr %s1411, 8
          %s1413 = scalar_lea.vmem %s14, %s1412
        $region120: #{tpu_custom_call.1} parent=111 // pred_fallthru
          _
        // Predicated region
        $region121: #{tpu_custom_call.1} parent=111 // pred_check
          %p1414 = pneg %p404
        $region122: #{tpu_custom_call.1} parent=111 // pred_check_branch
          %1416 = sbr.rel (%p1414) target = $region124
        $region123: #{tpu_custom_call.1} parent=111 // pred_region
          %p1417 = scmp.lt.s32.totalorder %s41, 1
          %s1418 = scalar_select %p1417, %s41, 1
          %s1419 = smul.addr %s1418, 8
          %s1420 = scalar_lea.vmem %s15, %s1419
        $region124: #{tpu_custom_call.1} parent=111 // pred_fallthru
          _
      $region112: #{tpu_custom_call.1} parent=5 // pred_fallthru
        _
    $region6: #{tpu_custom_call.1} parent=1 // loop_footer
      %s39 = sadd.s32 1, %s35
    $region7: #{tpu_custom_call.1} parent=1 // loop_footer_branch
      %34 = sbr.rel target = $region3
    $region8: #{tpu_custom_call.1} parent=1 // loop_exit
      _
    %1421 = vsyncpa [#allocation5], 1
    %s1422 = scalar_lea.sflag [#allocation5], 1
    %1423 = vsyncpa %s1422, 1
    %1424 = vsyncpa [#allocation8], 1
    %s1425 = scalar_lea.sflag [#allocation8], 1
    %1426 = vsyncpa %s1425, 1
    %1427 = vsyncpa [#allocation11], 1
    %1428 = vsyncpa [#allocation14], 1
    %1429 = vsyncpa [#allocation6], 1
    %s1430 = scalar_lea.sflag [#allocation6], 1
    %1431 = vsyncpa %s1430, 1

</llo_original>
